<compile_context>
chip_gen: v7x
topology: tpu7x:2x2x1
jax: 0.10.0
libtpu: 0.0.40
codegen_flags: <defaults>
</compile_context>

<pallas_src>
import functools

import jax
import jax.numpy as jnp
from jax import lax
from jax.experimental import pallas as pl
from jax.experimental.pallas import tpu as pltpu


# ---------------------------------------------------------------------------
# Fused matmul Pallas kernel
#   out = [relu]( (X @ W) * scale + shift )  [ + (X2 @ W2) + shift2 ]
# X/W (and X2/W2) are fed to the MXU in bf16; accumulation + epilogue are f32.
# The main accumulator lives directly in the f32 output block (resident in VMEM
# across the K grid axis); the optional second (post-ReLU, residual-conv) matmul
# accumulates into a VMEM scratch buffer.
# ---------------------------------------------------------------------------
def _fused_matmul_kernel(has_add, apply_relu, x_ref, w_ref, s_ref, b_ref, *rest):
    if has_add:
        x2_ref, w2_ref, b2_ref, o_ref, acc2_ref = rest
    else:
        (o_ref,) = rest

    k = pl.program_id(2)

    @pl.when(k == 0)
    def _init():
        o_ref[...] = jnp.zeros_like(o_ref)
        if has_add:
            acc2_ref[...] = jnp.zeros_like(acc2_ref)

    o_ref[...] += jnp.dot(x_ref[...], w_ref[...],
                          preferred_element_type=jnp.float32)
    if has_add:
        acc2_ref[...] += jnp.dot(x2_ref[...], w2_ref[...],
                                 preferred_element_type=jnp.float32)

    @pl.when(k == pl.num_programs(2) - 1)
    def _epilogue():
        y = o_ref[...] * s_ref[...] + b_ref[...]
        if apply_relu:
            y = jnp.maximum(y, 0.0)
        if has_add:
            y = y + acc2_ref[...] + b2_ref[...]
        o_ref[...] = y


def _pick_tile(dim, cap, mult):
    """Largest tile <= cap that is a multiple of `mult` and divides `dim`."""
    if dim <= cap:
        return dim
    t = (cap // mult) * mult
    while t >= mult:
        if dim % t == 0:
            return t
        t -= mult
    return dim


def fused_matmul(x, w, scale, shift, *, apply_relu=False, add=None):
    """x: (M, K), w: (K, N), scale/shift: (N,).

    add: optional (x2, w2, shift2) with x2: (M, K2), w2: (K2, N), shift2: (N,),
         K % K2 == 0.  Its product is added after the ReLU (residual conv path).
    Returns f32 (M, N).
    """
    M, K = x.shape
    N = w.shape[1]

    tm = _pick_tile(M, 512, 16)
    tn = _pick_tile(N, 256, 128)
    # Keep >= 2 blocks along a "parallel" grid axis whenever possible so dual-TC
    # chips (v7x) get work on both cores.
    if (M // tm) * (N // tn) == 1:
        if tn >= 256:
            tn //= 2
        elif tm >= 32 and tm % 32 == 0:
            tm //= 2

    if add is not None:
        x2, w2, shift2 = add
        K2 = x2.shape[1]
        assert K % K2 == 0
        ck = _pick_tile(K2, 1024, 128)
        tk = (K // K2) * ck
    else:
        tk = _pick_tile(K, 9216, 128)
    grid = (M // tm, N // tn, K // tk)

    scale_2d = scale.reshape(1, N).astype(jnp.float32)
    shift_2d = shift.reshape(1, N).astype(jnp.float32)

    in_specs = [
        pl.BlockSpec((tm, tk), lambda i, j, k: (i, k)),
        pl.BlockSpec((tk, tn), lambda i, j, k: (k, j)),
        pl.BlockSpec((1, tn), lambda i, j, k: (0, j)),
        pl.BlockSpec((1, tn), lambda i, j, k: (0, j)),
    ]
    args = [x.astype(jnp.bfloat16), w.astype(jnp.bfloat16), scale_2d, shift_2d]
    scratch = []
    if add is not None:
        in_specs += [
            pl.BlockSpec((tm, ck), lambda i, j, k: (i, k)),
            pl.BlockSpec((ck, tn), lambda i, j, k: (k, j)),
            pl.BlockSpec((1, tn), lambda i, j, k: (0, j)),
        ]
        args += [x2.astype(jnp.bfloat16), w2.astype(jnp.bfloat16),
                 shift2.reshape(1, N).astype(jnp.float32)]
        scratch = [pltpu.VMEM((tm, tn), jnp.float32)]

    kernel = functools.partial(_fused_matmul_kernel, add is not None, apply_relu)

    return pl.pallas_call(
        kernel,
        out_shape=jax.ShapeDtypeStruct((M, N), jnp.float32),
        grid_spec=pltpu.PrefetchScalarGridSpec(
            num_scalar_prefetch=0,
            grid=grid,
            in_specs=in_specs,
            out_specs=pl.BlockSpec((tm, tn), lambda i, j, k: (i, j)),
            scratch_shapes=scratch,
        ),
        compiler_params=pltpu.CompilerParams(
            dimension_semantics=("parallel", "parallel", "arbitrary"),
            vmem_limit_bytes=48 * 1024 * 1024),
    )(*args)


# ---------------------------------------------------------------------------
# Conv building blocks (im2col glue in plain JAX, all compute in the kernel)
# ---------------------------------------------------------------------------
def _im2col_3x3(xp, h, w):
    """xp: (B, h+2, w+2, C) -> (B*h*w, C*9) with column order (cin, kh, kw)."""
    b, _, _, c = xp.shape
    cols = [xp[:, kh:kh + h, kw:kw + w, :] for kh in range(3) for kw in range(3)]
    patches = jnp.stack(cols, axis=-1)               # (B, h, w, C, 9)
    return patches.reshape(b * h * w, c * 9)


def conv3x3(x, prep, *, apply_relu=False, add=None):
    """x: (B,H,W,Cin) NHWC; prep: dict(w=(Cin*9,Cout) bf16, scale, shift)."""
    B, H, W, _ = x.shape
    Cout = prep["w"].shape[1]
    xp = jnp.pad(x, ((0, 0), (1, 1), (1, 1), (0, 0)))
    patches = _im2col_3x3(xp, H, W)
    out = fused_matmul(patches, prep["w"], prep["scale"], prep["shift"],
                       apply_relu=apply_relu, add=add)
    return out.reshape(B, H, W, Cout)


def conv_transpose_s2(x, prep):
    """ConvTranspose2d(3, stride=2, pad=1, output_pad=1) via sub-pixel matmul.

    x: (B,H,W,Cin); prep["w"]: (4*Cin, 4*Cout) bf16 (rows (dh,dw,cin),
    cols (ph,pw,cout)); output (B, 2H, 2W, Cout).
    """
    B, H, W, Cin = x.shape
    Cout = prep["w"].shape[1] // 4
    xp = jnp.pad(x, ((0, 0), (0, 1), (0, 1), (0, 0)))
    cols = [xp[:, dh:dh + H, dw:dw + W, :] for dh in (0, 1) for dw in (0, 1)]
    patches = jnp.concatenate(cols, axis=-1).reshape(B * H * W, 4 * Cin)
    out = fused_matmul(patches, prep["w"], prep["scale"], prep["shift"])
    out = out.reshape(B, H, W, 2, 2, Cout)
    out = jnp.transpose(out, (0, 1, 3, 2, 4, 5)).reshape(B, 2 * H, 2 * W, Cout)
    return out


def res_conv_block(x, prep):
    """conv3x3+BN+ReLU -> conv3x3+BN+ReLU, then + (1x1 residual conv of input)."""
    B, H, W, Cin = x.shape
    h = conv3x3(x, prep["c1"], apply_relu=True)
    x_flat = x.reshape(B * H * W, Cin)
    return conv3x3(h, prep["c2"], apply_relu=True,
                   add=(x_flat, prep["res_w"], prep["res_b"]))


def decoder_forward(prepared, en_list, x):
    en1, en2, en3, en4 = en_list                       # NHWC
    x = conv_transpose_s2(x, prepared["up4"])
    x = jnp.concatenate([en4, x], axis=-1)
    x = res_conv_block(x, prepared["de4"])
    x = conv_transpose_s2(x, prepared["up3"])
    x = jnp.concatenate([en3, x], axis=-1)
    x = res_conv_block(x, prepared["de3"])
    x = conv_transpose_s2(x, prepared["up2"])
    x = jnp.concatenate([en2, x], axis=-1)
    x = res_conv_block(x, prepared["de2"])
    x = conv_transpose_s2(x, prepared["up1"])
    x = jnp.concatenate([en1, x], axis=-1)
    x = res_conv_block(x, prepared["de1"])
    return x


# ---------------------------------------------------------------------------
# One-time parameter preparation (PyTorch layouts -> matmul-ready bf16 matrices,
# eval-mode BN folded into f32 scale/shift).  Done outside the timed forward so
# the kernels only stream bf16 weights.
# ---------------------------------------------------------------------------
def fold_bn(conv_bias, bn, eps=1e-5):
    gamma, beta, mean, var = bn
    scale = gamma / jnp.sqrt(var + eps)
    shift = beta + scale * (conv_bias - mean)
    return scale.astype(jnp.float32), shift.astype(jnp.float32)


def _prep_conv3x3(w, conv_b, bn):
    cout, cin = w.shape[0], w.shape[1]
    wm = jnp.transpose(w, (1, 2, 3, 0)).reshape(cin * 9, cout)   # rows (cin,kh,kw)
    scale, shift = fold_bn(conv_b, bn)
    return dict(w=wm.astype(jnp.bfloat16), scale=scale, shift=shift)


def _prep_res_block(p):
    cin = p["w1"].shape[1]
    cout = p["w2"].shape[0]
    return dict(
        c1=_prep_conv3x3(p["w1"], p["b1"], p["bn1"]),
        c2=_prep_conv3x3(p["w2"], p["b2"], p["bn2"]),
        res_w=p["res_w"].reshape(cout, cin).T.astype(jnp.bfloat16),
        res_b=p["res_b"].astype(jnp.float32),
    )


def _prep_convT(w_t, bias):
    """w_t: PyTorch ConvTranspose2d (Cin, Cout, 3, 3) -> sub-pixel weight matrix."""
    cin, cout = w_t.shape[0], w_t.shape[1]

    def tap(parity, d):
        # output parity (0 even / 1 odd), input offset d in {0,1} -> kernel index
        if parity == 0:
            return 1 if d == 0 else None
        return 2 if d == 0 else 0

    rows = []
    for dh in (0, 1):
        for dw in (0, 1):
            cols = []
            for ph in (0, 1):
                for pw in (0, 1):
                    kh, kw = tap(ph, dh), tap(pw, dw)
                    if kh is None or kw is None:
                        cols.append(jnp.zeros((cin, cout), w_t.dtype))
                    else:
                        cols.append(w_t[:, :, kh, kw])
            rows.append(jnp.concatenate(cols, axis=1))            # (Cin, 4*Cout)
    wm = jnp.concatenate(rows, axis=0)                            # (4*Cin, 4*Cout)
    return dict(w=wm.astype(jnp.bfloat16),
                scale=jnp.ones((4 * cout,), jnp.float32),
                shift=jnp.tile(bias, 4).astype(jnp.float32))


def prepare_decoder_params(params):
    return {
        "up4": _prep_convT(*params["up4"]), "de4": _prep_res_block(params["de4"]),
        "up3": _prep_convT(*params["up3"]), "de3": _prep_res_block(params["de3"]),
        "up2": _prep_convT(*params["up2"]), "de2": _prep_res_block(params["de2"]),
        "up1": _prep_convT(*params["up1"]), "de1": _prep_res_block(params["de1"]),
    }


# ---------------------------------------------------------------------------
# Deterministic parameter init (synthetic weights, PyTorch layouts)
# ---------------------------------------------------------------------------
def _init_conv(key, cout, cin, k):
    k1, k2 = jax.random.split(key)
    bound = 1.0 / float(cin * k * k) ** 0.5
    w = jax.random.uniform(k1, (cout, cin, k, k), jnp.float32, -bound, bound)
    b = jax.random.uniform(k2, (cout,), jnp.float32, -bound, bound)
    return w, b


def _init_convT(key, cin, cout):
    k1, k2 = jax.random.split(key)
    bound = 1.0 / float(cout * 9) ** 0.5
    w = jax.random.uniform(k1, (cin, cout, 3, 3), jnp.float32, -bound, bound)
    b = jax.random.uniform(k2, (cout,), jnp.float32, -bound, bound)
    return w, b


def _init_bn(key, c):
    k1, k2, k3, k4 = jax.random.split(key, 4)
    gamma = 1.0 + 0.1 * jax.random.normal(k1, (c,), jnp.float32)
    beta = 0.1 * jax.random.normal(k2, (c,), jnp.float32)
    mean = 0.1 * jax.random.normal(k3, (c,), jnp.float32)
    var = jax.random.uniform(k4, (c,), jnp.float32, 0.5, 1.5)
    return gamma, beta, mean, var


def _init_res_block(key, cin, cout):
    ks = jax.random.split(key, 5)
    w1, b1 = _init_conv(ks[0], cin, cin, 3)
    bn1 = _init_bn(ks[1], cin)
    w2, b2 = _init_conv(ks[2], cout, cin, 3)
    bn2 = _init_bn(ks[3], cout)
    wr, br = _init_conv(ks[4], cout, cin, 1)
    return dict(w1=w1, b1=b1, bn1=bn1, w2=w2, b2=b2, bn2=bn2, res_w=wr, res_b=br)


def init_decoder(key, in_ch=1024):
    ks = jax.random.split(key, 8)
    return {
        "up4": _init_convT(ks[0], in_ch, 512),
        "de4": _init_res_block(ks[1], 512 * 2, 512),
        "up3": _init_convT(ks[2], 512, 256),
        "de3": _init_res_block(ks[3], 256 * 2, 256),
        "up2": _init_convT(ks[4], 256, 128),
        "de2": _init_res_block(ks[5], 128 * 2, 128),
        "up1": _init_convT(ks[6], 128, 64),
        "de1": _init_res_block(ks[7], 64 * 2, 64),
    }


def _bf16_round(v):
    return v.astype(jnp.bfloat16).astype(jnp.float32)


# ---------------------------------------------------------------------------
if __name__ == "__main__":
    key = jax.random.PRNGKey(0)
    kp, kx, k1, k2, k3, k4 = jax.random.split(key, 6)

    # ---- correctness check 1: fused matmul (+ post-relu residual matmul) ----
    xa = jax.random.normal(jax.random.PRNGKey(10), (64, 1152), jnp.float32)
    wa = jax.random.normal(jax.random.PRNGKey(11), (1152, 128), jnp.float32) * 0.05
    sc = jax.random.normal(jax.random.PRNGKey(12), (128,), jnp.float32)
    sh = jax.random.normal(jax.random.PRNGKey(13), (128,), jnp.float32)
    x2 = jax.random.normal(jax.random.PRNGKey(14), (64, 128), jnp.float32)
    w2 = jax.random.normal(jax.random.PRNGKey(15), (128, 128), jnp.float32) * 0.05
    sh2 = jax.random.normal(jax.random.PRNGKey(16), (128,), jnp.float32)
    ref = (jnp.maximum(jnp.dot(_bf16_round(xa), _bf16_round(wa),
                               precision=lax.Precision.HIGHEST) * sc + sh, 0.0)
           + jnp.dot(_bf16_round(x2), _bf16_round(w2),
                     precision=lax.Precision.HIGHEST) + sh2)
    got = fused_matmul(xa, wa, sc, sh, apply_relu=True, add=(x2, w2, sh2))
    assert jnp.allclose(ref, got, atol=1e-2, rtol=1e-2), "fused matmul mismatch"

    # ---- correctness check 2: sub-pixel ConvTranspose2d vs lax reference ----
    xt = jax.random.normal(jax.random.PRNGKey(20), (2, 3, 3, 16), jnp.float32)
    wt = jax.random.normal(jax.random.PRNGKey(21), (16, 8, 3, 3), jnp.float32) * 0.1
    bt = jax.random.normal(jax.random.PRNGKey(22), (8,), jnp.float32) * 0.1
    got_t = conv_transpose_s2(xt, _prep_convT(wt, bt))
    rhs = jnp.transpose(_bf16_round(wt)[:, :, ::-1, ::-1], (2, 3, 0, 1))  # HWIO
    ref_t = lax.conv_general_dilated(
        _bf16_round(xt), rhs, window_strides=(1, 1), padding=((1, 2), (1, 2)),
        lhs_dilation=(2, 2), dimension_numbers=("NHWC", "HWIO", "NHWC"),
        precision=lax.Precision.HIGHEST) + bt
    assert jnp.allclose(ref_t, got_t, atol=1e-2, rtol=1e-2), "conv_transpose mismatch"

    # ---- correctness check 3: 3x3 conv (im2col ordering) vs lax reference ----
    xc = jax.random.normal(jax.random.PRNGKey(30), (2, 4, 4, 16), jnp.float32)
    wc = jax.random.normal(jax.random.PRNGKey(31), (8, 16, 3, 3), jnp.float32) * 0.2
    scc = jax.random.normal(jax.random.PRNGKey(32), (8,), jnp.float32)
    shc = jax.random.normal(jax.random.PRNGKey(33), (8,), jnp.float32)
    prep_c = dict(w=jnp.transpose(wc, (1, 2, 3, 0)).reshape(16 * 9, 8)
                  .astype(jnp.bfloat16), scale=scc, shift=shc)
    got_c = conv3x3(xc, prep_c, apply_relu=True)
    ref_c = jnp.maximum(
        lax.conv_general_dilated(
            _bf16_round(xc), _bf16_round(jnp.transpose(wc, (2, 3, 1, 0))),
            window_strides=(1, 1), padding=((1, 1), (1, 1)),
            dimension_numbers=("NHWC", "HWIO", "NHWC"),
            precision=lax.Precision.HIGHEST) * scc + shc, 0.0)
    assert jnp.allclose(ref_c, got_c.reshape(ref_c.shape), atol=1e-2, rtol=1e-2), \
        "conv3x3 mismatch"

    # ---- full decoder forward ----
    B, in_ch = 2, 1024
    params = init_decoder(kp, in_ch)
    prepared = prepare_decoder_params(params)

    # Inputs (NHWC internally; PyTorch NCHW equivalents noted)
    x = jax.random.normal(kx, (B, 2, 2, in_ch), jnp.float32)      # NCHW (2,1024,2,2)
    en4 = jax.random.normal(k4, (B, 4, 4, 512), jnp.float32)      # NCHW (2,512,4,4)
    en3 = jax.random.normal(k3, (B, 8, 8, 256), jnp.float32)      # NCHW (2,256,8,8)
    en2 = jax.random.normal(k2, (B, 16, 16, 128), jnp.float32)    # NCHW (2,128,16,16)
    en1 = jax.random.normal(k1, (B, 32, 32, 64), jnp.float32)     # NCHW (2,64,32,32)

    fwd = jax.jit(decoder_forward)
    out_nhwc = jax.block_until_ready(fwd(prepared, (en1, en2, en3, en4), x))
    out_nchw = jnp.transpose(out_nhwc, (0, 3, 1, 2))  # match PyTorch NCHW output
    assert out_nchw.shape == (B, 64, 32, 32), out_nchw.shape
    assert bool(jnp.all(jnp.isfinite(out_nchw)))

    print("KERNEL_OK")
</pallas_src>

<mosaic_0001>
module attributes {stable_mosaic.version = 11 : i64} {
  func.func @_fused_matmul_kernel(%arg0: i32, %arg1: i32, %arg2: i32, %arg3: memref<32x1152xbf16, #tpu.memory_space<vmem>>, %arg4: memref<1152x128xbf16, #tpu.memory_space<vmem>>, %arg5: memref<1x128xf32, #tpu.memory_space<vmem>>, %arg6: memref<1x128xf32, #tpu.memory_space<vmem>>, %arg7: memref<32x128xbf16, #tpu.memory_space<vmem>>, %arg8: memref<128x128xbf16, #tpu.memory_space<vmem>>, %arg9: memref<1x128xf32, #tpu.memory_space<vmem>>, %arg10: memref<32x128xf32, #tpu.memory_space<vmem>>, %arg11: memref<32x128xf32, #tpu.memory_space<vmem>>) attributes {dimension_semantics = [#tpu.dimension_semantics<parallel>, #tpu.dimension_semantics<parallel>, #tpu.dimension_semantics<arbitrary>], iteration_bounds = array<i64: 2, 1, 1>, scalar_prefetch = 0 : i64, scratch_operands = 1 : i64, tpu.core_type = #tpu.core_type<tc>, window_params = [{transform_indices = @transform_0, window_bounds = array<i64: 32, 1152>}, {transform_indices = @transform_1, window_bounds = array<i64: 1152, 128>}, {transform_indices = @transform_2, window_bounds = array<i64: 1, 128>}, {transform_indices = @transform_3, window_bounds = array<i64: 1, 128>}, {transform_indices = @transform_4, window_bounds = array<i64: 32, 128>}, {transform_indices = @transform_5, window_bounds = array<i64: 128, 128>}, {transform_indices = @transform_6, window_bounds = array<i64: 1, 128>}, {transform_indices = @transform_7, window_bounds = array<i64: 32, 128>}]} {
    %c0_i32 = arith.constant 0 : i32
    %0 = arith.cmpi eq, %arg2, %c0_i32 : i32
    %1 = arith.extui %0 : i1 to i32
    %c0_i32_0 = arith.constant 0 : i32
    %2 = arith.cmpi ne, %1, %c0_i32_0 : i32
    scf.if %2 {
      %cst_19 = arith.constant 0.000000e+00 : f32
      %18 = vector.broadcast %cst_19 : f32 to vector<32x128xf32>
      %c0_20 = arith.constant 0 : index
      %c0_21 = arith.constant 0 : index
      %19 = vector.load %arg10[%c0_20, %c0_21] : memref<32x128xf32, #tpu.memory_space<vmem>>, vector<32x128xf32>
      tpu.vector_store %arg10[%c0_20, %c0_21], %18 {strides = array<i32>} : memref<32x128xf32, #tpu.memory_space<vmem>>, vector<32x128xf32>,
      %cst_22 = arith.constant 0.000000e+00 : f32
      %20 = vector.broadcast %cst_22 : f32 to vector<32x128xf32>
      %c0_23 = arith.constant 0 : index
      %c0_24 = arith.constant 0 : index
      %21 = vector.load %arg11[%c0_23, %c0_24] : memref<32x128xf32, #tpu.memory_space<vmem>>, vector<32x128xf32>
      tpu.vector_store %arg11[%c0_23, %c0_24], %20 {strides = array<i32>} : memref<32x128xf32, #tpu.memory_space<vmem>>, vector<32x128xf32>,
    } else {
    }
    %c0 = arith.constant 0 : index
    %c0_1 = arith.constant 0 : index
    %3 = vector.load %arg10[%c0, %c0_1] : memref<32x128xf32, #tpu.memory_space<vmem>>, vector<32x128xf32>
    %c0_2 = arith.constant 0 : index
    %c0_3 = arith.constant 0 : index
    %4 = vector.load %arg3[%c0_2, %c0_3] : memref<32x1152xbf16, #tpu.memory_space<vmem>>, vector<32x1152xbf16>
    %c0_4 = arith.constant 0 : index
    %c0_5 = arith.constant 0 : index
    %5 = vector.load %arg4[%c0_4, %c0_5] : memref<1152x128xbf16, #tpu.memory_space<vmem>>, vector<1152x128xbf16>
    %cst = arith.constant dense<0.000000e+00> : vector<32x128xf32>
    %6 = tpu.matmul %4, %5, %cst {dimension_numbers = #tpu.dot_dimension_numbers<[1], [0], [0], [1], [0, 0, 1, 1], [], []>} : vector<32x1152xbf16>, vector<1152x128xbf16>, vector<32x128xf32> -> vector<32x128xf32>
    %7 = arith.addf %3, %6 : vector<32x128xf32>
    %c0_6 = arith.constant 0 : index
    %c0_7 = arith.constant 0 : index
    %8 = vector.load %arg10[%c0_6, %c0_7] : memref<32x128xf32, #tpu.memory_space<vmem>>, vector<32x128xf32>
    tpu.vector_store %arg10[%c0_6, %c0_7], %7 {strides = array<i32>} : memref<32x128xf32, #tpu.memory_space<vmem>>, vector<32x128xf32>,
    %c0_8 = arith.constant 0 : index
    %c0_9 = arith.constant 0 : index
    %9 = vector.load %arg11[%c0_8, %c0_9] : memref<32x128xf32, #tpu.memory_space<vmem>>, vector<32x128xf32>
    %c0_10 = arith.constant 0 : index
    %c0_11 = arith.constant 0 : index
    %10 = vector.load %arg7[%c0_10, %c0_11] : memref<32x128xbf16, #tpu.memory_space<vmem>>, vector<32x128xbf16>
    %c0_12 = arith.constant 0 : index
    %c0_13 = arith.constant 0 : index
    %11 = vector.load %arg8[%c0_12, %c0_13] : memref<128x128xbf16, #tpu.memory_space<vmem>>, vector<128x128xbf16>
    %cst_14 = arith.constant dense<0.000000e+00> : vector<32x128xf32>
    %12 = tpu.matmul %10, %11, %cst_14 {dimension_numbers = #tpu.dot_dimension_numbers<[1], [0], [0], [1], [0, 0, 1, 1], [], []>} : vector<32x128xbf16>, vector<128x128xbf16>, vector<32x128xf32> -> vector<32x128xf32>
    %13 = arith.addf %9, %12 : vector<32x128xf32>
    %c0_15 = arith.constant 0 : index
    %c0_16 = arith.constant 0 : index
    %14 = vector.load %arg11[%c0_15, %c0_16] : memref<32x128xf32, #tpu.memory_space<vmem>>, vector<32x128xf32>
    tpu.vector_store %arg11[%c0_15, %c0_16], %13 {strides = array<i32>} : memref<32x128xf32, #tpu.memory_space<vmem>>, vector<32x128xf32>,
    %c0_i32_17 = arith.constant 0 : i32
    %15 = arith.cmpi eq, %arg2, %c0_i32_17 : i32
    %16 = arith.extui %15 : i1 to i32
    %c0_i32_18 = arith.constant 0 : i32
    %17 = arith.cmpi ne, %16, %c0_i32_18 : i32
    scf.if %17 {
      %c0_19 = arith.constant 0 : index
      %c0_20 = arith.constant 0 : index
      %18 = vector.load %arg10[%c0_19, %c0_20] : memref<32x128xf32, #tpu.memory_space<vmem>>, vector<32x128xf32>
      %c0_21 = arith.constant 0 : index
      %c0_22 = arith.constant 0 : index
      %19 = vector.load %arg5[%c0_21, %c0_22] : memref<1x128xf32, #tpu.memory_space<vmem>>, vector<1x128xf32>
      %20 = vector.broadcast %19 : vector<1x128xf32> to vector<32x128xf32>
      %21 = arith.mulf %18, %20 : vector<32x128xf32>
      %c0_23 = arith.constant 0 : index
      %c0_24 = arith.constant 0 : index
      %22 = vector.load %arg6[%c0_23, %c0_24] : memref<1x128xf32, #tpu.memory_space<vmem>>, vector<1x128xf32>
      %23 = vector.broadcast %22 : vector<1x128xf32> to vector<32x128xf32>
      %24 = arith.addf %21, %23 : vector<32x128xf32>
      %cst_25 = arith.constant 0.000000e+00 : f32
      %25 = vector.broadcast %cst_25 : f32 to vector<32x128xf32>
      %26 = arith.maximumf %24, %25 : vector<32x128xf32>
      %c0_26 = arith.constant 0 : index
      %c0_27 = arith.constant 0 : index
      %27 = vector.load %arg11[%c0_26, %c0_27] : memref<32x128xf32, #tpu.memory_space<vmem>>, vector<32x128xf32>
      %28 = arith.addf %26, %27 : vector<32x128xf32>
      %c0_28 = arith.constant 0 : index
      %c0_29 = arith.constant 0 : index
      %29 = vector.load %arg9[%c0_28, %c0_29] : memref<1x128xf32, #tpu.memory_space<vmem>>, vector<1x128xf32>
      %30 = vector.broadcast %29 : vector<1x128xf32> to vector<32x128xf32>
      %31 = arith.addf %28, %30 : vector<32x128xf32>
      %c0_30 = arith.constant 0 : index
      %c0_31 = arith.constant 0 : index
      %32 = vector.load %arg10[%c0_30, %c0_31] : memref<32x128xf32, #tpu.memory_space<vmem>>, vector<32x128xf32>
      tpu.vector_store %arg10[%c0_30, %c0_31], %31 {strides = array<i32>} : memref<32x128xf32, #tpu.memory_space<vmem>>, vector<32x128xf32>,
    } else {
    }
    return
  }
  func.func @transform_0(%arg0: i32, %arg1: i32, %arg2: i32) -> (i32, i32) {
    %c0_i32 = arith.constant 0 : i32
    return %arg0, %arg2 : i32, i32
  }
  func.func @transform_1(%arg0: i32, %arg1: i32, %arg2: i32) -> (i32, i32) {
    %c0_i32 = arith.constant 0 : i32
    return %arg2, %arg1 : i32, i32
  }
  func.func @transform_2(%arg0: i32, %arg1: i32, %arg2: i32) -> (i32, i32) {
    %c0_i32 = arith.constant 0 : i32
    %c0_i32_0 = arith.constant 0 : i32
    return %c0_i32, %arg1 : i32, i32
  }
  func.func @transform_3(%arg0: i32, %arg1: i32, %arg2: i32) -> (i32, i32) {
    %c0_i32 = arith.constant 0 : i32
    %c0_i32_0 = arith.constant 0 : i32
    return %c0_i32, %arg1 : i32, i32
  }
  func.func @transform_4(%arg0: i32, %arg1: i32, %arg2: i32) -> (i32, i32) {
    %c0_i32 = arith.constant 0 : i32
    return %arg0, %arg2 : i32, i32
  }
  func.func @transform_5(%arg0: i32, %arg1: i32, %arg2: i32) -> (i32, i32) {
    %c0_i32 = arith.constant 0 : i32
    return %arg2, %arg1 : i32, i32
  }
  func.func @transform_6(%arg0: i32, %arg1: i32, %arg2: i32) -> (i32, i32) {
    %c0_i32 = arith.constant 0 : i32
    %c0_i32_0 = arith.constant 0 : i32
    return %c0_i32, %arg1 : i32, i32
  }
  func.func @transform_7(%arg0: i32, %arg1: i32, %arg2: i32) -> (i32, i32) {
    %c0_i32 = arith.constant 0 : i32
    return %arg0, %arg1 : i32, i32
  }
}

</mosaic_0001>

<llo_original>
// kernel: tpu_custom_call.1
$region0: #{tpu_custom_call.1}
  #allocation0 [shape = 'u32[]', space=smem, size = 0x4, offset = 0x4, fixed_abs, tag = 'smem constant byte address 0x4 - core index']
  #allocation1 [shape = 'u32[144,128]{1,0:T(1,128)}', space=vmem, size = 0x12000, scoped, tag = 'internal scratch']
  #allocation2 [shape = 'f32[32,128]{1,0:T(8,128)}', space=vmem, size = 0x4000, scoped, tag = 'scratch operand']
  %s0 = inlined_call_operand.hbm [shape: bf16[64,1152], index: 0, kind: input, shape index: {}]
  %s1 = inlined_call_operand.hbm [shape: bf16[1152,128], index: 1, kind: input, shape index: {}]
  %s2 = inlined_call_operand.vmem [shape: f32[1,128], index: 2, kind: input, shape index: {}]
  %s3 = inlined_call_operand.vmem [shape: f32[1,128], index: 3, kind: input, shape index: {}]
  %s4 = inlined_call_operand.hbm [shape: bf16[64,128], index: 4, kind: input, shape index: {}]
  %s5 = inlined_call_operand.hbm [shape: bf16[128,128], index: 5, kind: input, shape index: {}]
  %s6 = inlined_call_operand.vmem [shape: f32[1,128], index: 6, kind: input, shape index: {}]
  %s7 = inlined_call_operand.hbm [shape: f32[64,128], index: 7, kind: output, shape index: {}]
  %s8 = sld [smem:[#allocation0]]
  $region85: #{tpu_custom_call.1} parent=0
    _
  %s10 = ssub.s32 1, %s8
  %s11 = scalar_select 0, %s10, %s8
  $region1: #{tpu_custom_call.1} parent=0
    #allocation3 [shape = 'u8[147456]{0}', space=vmem, size = 0x24000, scoped, tag = 'input window, operand 0']
    #allocation4 [shape = 's32[2]{0}', space=sflag, size = 0x8, scoped, tag = 'scoped memory for tpu_custom_call.1']
    #allocation5 [shape = 's32[2]{0}', space=sflag, size = 0x8, scoped, tag = 'scoped memory for tpu_custom_call.1']
    #allocation6 [shape = 'u8[294912]{0}', space=vmem, size = 0x48000, scoped, tag = 'input window, operand 1, single buffered']
    #allocation7 [shape = 's32[1]{0}', space=sflag, size = 0x4, scoped, tag = 'scoped memory for tpu_custom_call.1']
    #allocation8 [shape = 'u8[16384]{0}', space=vmem, size = 0x4000, scoped, tag = 'input window, operand 4']
    #allocation9 [shape = 'u8[32768]{0}', space=vmem, size = 0x8000, scoped, tag = 'input window, operand 5, single buffered']
    #allocation10 [shape = 'u8[32768]{0}', space=vmem, size = 0x8000, scoped, tag = 'output window, operand 0']
    %12 = vsyncpa [#allocation4], 0
    %s13 = scalar_lea.sflag [#allocation4], 1
    %14 = vsyncpa %s13, 0
    %15 = vsyncpa [#allocation7], 0
    %16 = vsyncpa [#allocation5], 0
    %s17 = scalar_lea.sflag [#allocation5], 1
    %18 = vsyncpa %s17, 0
    loop: start=0, step=1, limit=4
    $region2: #{tpu_custom_call.1} parent=1 // loop_pre_header
      _
    $region3: #{tpu_custom_call.1} parent=1 // loop_header
      %s20 = sphi 0, %s24
      %p21 = scmp.ge.s32.totalorder %s20, 4
      %s27 = sphi 0, %s46
      %s28 = sphi 0, %s42
      %s29 = sphi 0, %s38
      %s30 = sphi 0, %s27
      %s31 = sphi 0, %s28
      %s32 = sphi 0, %s29
      %s33 = sphi 0, %s30
      %s34 = sphi 0, %s31
      %s35 = sphi 0, %s32
      %s51 = sphi 0, %s53
      %s54 = sphi 0, %s51
      %s55 = sphi 0, %s54
      %s71 = sphi 0, %s55
      %s79 = sphi 0, %s81
      %s82 = sphi 0, %s79
      %s83 = sphi 0, %s82
      %s99 = sphi 0, %s83
      %s105 = sphi 0, %s107
      %s108 = sphi 0, %s105
      %s109 = sphi 0, %s108
      %s125 = sphi 0, %s109
      %s131 = sphi 0, %s133
      %s134 = sphi 0, %s131
      %s135 = sphi 0, %s134
      %s151 = sphi 0, %s135
      %s159 = sphi 0, %s161
      %s162 = sphi 0, %s159
      %s163 = sphi 0, %s162
      %s179 = sphi 0, %s163
      %s187 = sphi 0, %s189
      %s190 = sphi 0, %s187
      %s191 = sphi 0, %s190
      %s207 = sphi 0, %s191
      %s213 = sphi 0, %s215
      %s216 = sphi 0, %s213
      %s217 = sphi 0, %s216
      %s233 = sphi 0, %s217
      %s241 = sphi 0, %s243
      %s244 = sphi 0, %s241
      %s245 = sphi 0, %s244
      %s261 = sphi 0, %s245
    $region4: #{tpu_custom_call.1} parent=1 // loop_header_branch
      %23 = sbr.rel (%p21) target = $region8
    $region5: #{tpu_custom_call.1} parent=1 // loop_body
      %s25 = ssub.s32 %s20, 1
      %s26 = ssub.s32 %s20, 2
      %s36 = sadd.s32 1, %s29
      %p37 = scmp.ge.s32.totalorder %s36, 1
      %s38 = scalar_select %p37, 0, %s36
      %s39 = sadd.s32 1, %s28
      %s40 = scalar_select %p37, %s39, %s28
      %p41 = scmp.ge.s32.totalorder %s40, 1
      %s42 = scalar_select %p41, 0, %s40
      %s43 = sadd.s32 1, %s27
      %s44 = scalar_select %p41, %s43, %s27
      %p45 = scmp.ge.s32.totalorder %s44, 2
      %s46 = scalar_select %p45, 0, %s44
      %s47 = ssub.s32 %s27, %s46
      %s48 = ssub.s32 %s29, %s38
      %s49 = sor.u32 %s47, %s48
      %p50 = scmp.eq.s32.totalorder %s49, 0
      %s52 = sadd.s32 %s51, 1
      %s53 = scalar_select %p50, %s51, %s52
      %p56 = pneg %p50
      %p57 = scmp.eq.s32.totalorder %s20, 1
      %p58 = por %p56, %p57
      %p59 = scmp.ne.s32.totalorder %s51, %s54
      %p60 = scmp.eq.s32.totalorder %s20, 0
      %p61 = por %p59, %p60
      %p62 = scmp.ne.s32.totalorder %s51, %s54
      %p63 = scmp.eq.s32.totalorder %s25, 1
      %p64 = por %p62, %p63
      %p65 = scmp.ne.s32.totalorder %s54, %s55
      %p66 = scmp.eq.s32.totalorder %s25, 0
      %p67 = por %p65, %p66
      %p68 = scmp.ne.s32.totalorder %s54, %s55
      %p69 = scmp.eq.s32.totalorder %s26, 1
      %p70 = por %p68, %p69
      %p72 = scmp.ne.s32.totalorder %s55, %s71
      %p73 = scmp.eq.s32.totalorder %s26, 0
      %p74 = por %p72, %p73
      %s75 = ssub.s32 %s29, %s38
      %s76 = ssub.s32 %s28, %s42
      %s77 = sor.u32 %s75, %s76
      %p78 = scmp.eq.s32.totalorder %s77, 0
      %s80 = sadd.s32 %s79, 1
      %s81 = scalar_select %p78, %s79, %s80
      %p84 = pneg %p78
      %p85 = scmp.eq.s32.totalorder %s20, 1
      %p86 = por %p84, %p85
      %p87 = scmp.ne.s32.totalorder %s79, %s82
      %p88 = scmp.eq.s32.totalorder %s20, 0
      %p89 = por %p87, %p88
      %p90 = scmp.ne.s32.totalorder %s79, %s82
      %p91 = scmp.eq.s32.totalorder %s25, 1
      %p92 = por %p90, %p91
      %p93 = scmp.ne.s32.totalorder %s82, %s83
      %p94 = scmp.eq.s32.totalorder %s25, 0
      %p95 = por %p93, %p94
      %p96 = scmp.ne.s32.totalorder %s82, %s83
      %p97 = scmp.eq.s32.totalorder %s26, 1
      %p98 = por %p96, %p97
      %p100 = scmp.ne.s32.totalorder %s83, %s99
      %p101 = scmp.eq.s32.totalorder %s26, 0
      %p102 = por %p100, %p101
      %s103 = ssub.s32 %s28, %s42
      %p104 = scmp.eq.s32.totalorder %s103, 0
      %s106 = sadd.s32 %s105, 1
      %s107 = scalar_select %p104, %s105, %s106
      %p110 = pneg %p104
      %p111 = scmp.eq.s32.totalorder %s20, 1
      %p112 = por %p110, %p111
      %p113 = scmp.ne.s32.totalorder %s105, %s108
      %p114 = scmp.eq.s32.totalorder %s20, 0
      %p115 = por %p113, %p114
      %p116 = scmp.ne.s32.totalorder %s105, %s108
      %p117 = scmp.eq.s32.totalorder %s25, 1
      %p118 = por %p116, %p117
      %p119 = scmp.ne.s32.totalorder %s108, %s109
      %p120 = scmp.eq.s32.totalorder %s25, 0
      %p121 = por %p119, %p120
      %p122 = scmp.ne.s32.totalorder %s108, %s109
      %p123 = scmp.eq.s32.totalorder %s26, 1
      %p124 = por %p122, %p123
      %p126 = scmp.ne.s32.totalorder %s109, %s125
      %p127 = scmp.eq.s32.totalorder %s26, 0
      %p128 = por %p126, %p127
      %s129 = ssub.s32 %s28, %s42
      %p130 = scmp.eq.s32.totalorder %s129, 0
      %s132 = sadd.s32 %s131, 1
      %s133 = scalar_select %p130, %s131, %s132
      %p136 = pneg %p130
      %p137 = scmp.eq.s32.totalorder %s20, 1
      %p138 = por %p136, %p137
      %p139 = scmp.ne.s32.totalorder %s131, %s134
      %p140 = scmp.eq.s32.totalorder %s20, 0
      %p141 = por %p139, %p140
      %p142 = scmp.ne.s32.totalorder %s131, %s134
      %p143 = scmp.eq.s32.totalorder %s25, 1
      %p144 = por %p142, %p143
      %p145 = scmp.ne.s32.totalorder %s134, %s135
      %p146 = scmp.eq.s32.totalorder %s25, 0
      %p147 = por %p145, %p146
      %p148 = scmp.ne.s32.totalorder %s134, %s135
      %p149 = scmp.eq.s32.totalorder %s26, 1
      %p150 = por %p148, %p149
      %p152 = scmp.ne.s32.totalorder %s135, %s151
      %p153 = scmp.eq.s32.totalorder %s26, 0
      %p154 = por %p152, %p153
      %s155 = ssub.s32 %s27, %s46
      %s156 = ssub.s32 %s29, %s38
      %s157 = sor.u32 %s155, %s156
      %p158 = scmp.eq.s32.totalorder %s157, 0
      %s160 = sadd.s32 %s159, 1
      %s161 = scalar_select %p158, %s159, %s160
      %p164 = pneg %p158
      %p165 = scmp.eq.s32.totalorder %s20, 1
      %p166 = por %p164, %p165
      %p167 = scmp.ne.s32.totalorder %s159, %s162
      %p168 = scmp.eq.s32.totalorder %s20, 0
      %p169 = por %p167, %p168
      %p170 = scmp.ne.s32.totalorder %s159, %s162
      %p171 = scmp.eq.s32.totalorder %s25, 1
      %p172 = por %p170, %p171
      %p173 = scmp.ne.s32.totalorder %s162, %s163
      %p174 = scmp.eq.s32.totalorder %s25, 0
      %p175 = por %p173, %p174
      %p176 = scmp.ne.s32.totalorder %s162, %s163
      %p177 = scmp.eq.s32.totalorder %s26, 1
      %p178 = por %p176, %p177
      %p180 = scmp.ne.s32.totalorder %s163, %s179
      %p181 = scmp.eq.s32.totalorder %s26, 0
      %p182 = por %p180, %p181
      %s183 = ssub.s32 %s29, %s38
      %s184 = ssub.s32 %s28, %s42
      %s185 = sor.u32 %s183, %s184
      %p186 = scmp.eq.s32.totalorder %s185, 0
      %s188 = sadd.s32 %s187, 1
      %s189 = scalar_select %p186, %s187, %s188
      %p192 = pneg %p186
      %p193 = scmp.eq.s32.totalorder %s20, 1
      %p194 = por %p192, %p193
      %p195 = scmp.ne.s32.totalorder %s187, %s190
      %p196 = scmp.eq.s32.totalorder %s20, 0
      %p197 = por %p195, %p196
      %p198 = scmp.ne.s32.totalorder %s187, %s190
      %p199 = scmp.eq.s32.totalorder %s25, 1
      %p200 = por %p198, %p199
      %p201 = scmp.ne.s32.totalorder %s190, %s191
      %p202 = scmp.eq.s32.totalorder %s25, 0
      %p203 = por %p201, %p202
      %p204 = scmp.ne.s32.totalorder %s190, %s191
      %p205 = scmp.eq.s32.totalorder %s26, 1
      %p206 = por %p204, %p205
      %p208 = scmp.ne.s32.totalorder %s191, %s207
      %p209 = scmp.eq.s32.totalorder %s26, 0
      %p210 = por %p208, %p209
      %s211 = ssub.s32 %s28, %s42
      %p212 = scmp.eq.s32.totalorder %s211, 0
      %s214 = sadd.s32 %s213, 1
      %s215 = scalar_select %p212, %s213, %s214
      %p218 = pneg %p212
      %p219 = scmp.eq.s32.totalorder %s20, 1
      %p220 = por %p218, %p219
      %p221 = scmp.ne.s32.totalorder %s213, %s216
      %p222 = scmp.eq.s32.totalorder %s20, 0
      %p223 = por %p221, %p222
      %p224 = scmp.ne.s32.totalorder %s213, %s216
      %p225 = scmp.eq.s32.totalorder %s25, 1
      %p226 = por %p224, %p225
      %p227 = scmp.ne.s32.totalorder %s216, %s217
      %p228 = scmp.eq.s32.totalorder %s25, 0
      %p229 = por %p227, %p228
      %p230 = scmp.ne.s32.totalorder %s216, %s217
      %p231 = scmp.eq.s32.totalorder %s26, 1
      %p232 = por %p230, %p231
      %p234 = scmp.ne.s32.totalorder %s217, %s233
      %p235 = scmp.eq.s32.totalorder %s26, 0
      %p236 = por %p234, %p235
      %s237 = ssub.s32 %s27, %s46
      %s238 = ssub.s32 %s28, %s42
      %s239 = sor.u32 %s237, %s238
      %p240 = scmp.eq.s32.totalorder %s239, 0
      %s242 = sadd.s32 %s241, 1
      %s243 = scalar_select %p240, %s241, %s242
      %p246 = pneg %p240
      %p247 = scmp.eq.s32.totalorder %s20, 1
      %p248 = por %p246, %p247
      %p249 = scmp.ne.s32.totalorder %s241, %s244
      %p250 = scmp.eq.s32.totalorder %s20, 0
      %p251 = por %p249, %p250
      %p252 = scmp.ne.s32.totalorder %s241, %s244
      %p253 = scmp.eq.s32.totalorder %s25, 1
      %p254 = por %p252, %p253
      %p255 = scmp.ne.s32.totalorder %s244, %s245
      %p256 = scmp.eq.s32.totalorder %s25, 0
      %p257 = por %p255, %p256
      %p258 = scmp.ne.s32.totalorder %s244, %s245
      %p259 = scmp.eq.s32.totalorder %s26, 1
      %p260 = por %p258, %p259
      %p262 = scmp.ne.s32.totalorder %s245, %s261
      %p263 = scmp.eq.s32.totalorder %s26, 0
      %p264 = por %p262, %p263
      %p265 = scmp.le.s32.totalorder 1, %s20
      %p266 = scmp.lt.s32.totalorder %s20, 3
      %p267 = pnand %p265, %p266
      %p268 = pneg %p267
      // Predicated region
      $region9: #{tpu_custom_call.1} parent=5 // pred_check
        _
      $region10: #{tpu_custom_call.1} parent=5 // pred_check_branch
        %270 = sbr.rel (%p267) target = $region12
      $region11: #{tpu_custom_call.1} parent=5 // pred_region
        %s271 = ssub.s32 %s20, 1
        // Predicated region
        $region13: #{tpu_custom_call.1} parent=11 // pred_check
          %p272 = pneg %p95
        $region14: #{tpu_custom_call.1} parent=11 // pred_check_branch
          %274 = sbr.rel (%p272) target = $region16
        $region15: #{tpu_custom_call.1} parent=11 // pred_region
          %s275 = smul.u32 144, %s32
          %s277 = ssub.s32 9216, 9216
          %278 = vsyncadd [#allocation7], %s277
          %s279 = sadd.s32 %s31, %s275
          %s280 = smul.addr %s279, 64
          %s281 = scalar_lea.hbm %s1, %s280
          %s282 = sshll.u32 [#allocation6], 4
          %s283 = int_to_ptr.vmem [resolvable:$true] %s282
          %288 = dma.hbm_to_vmem [thread:$0]  %s281, 9216, %s283, [#allocation7], 64, 64, 4
        $region16: #{tpu_custom_call.1} parent=11 // pred_fallthru
          _
        // Predicated region
        $region17: #{tpu_custom_call.1} parent=11 // pred_check
          %p289 = pneg %p121
        $region18: #{tpu_custom_call.1} parent=11 // pred_check_branch
          %291 = sbr.rel (%p289) target = $region20
        $region19: #{tpu_custom_call.1} parent=11 // pred_region
          %p292 = scmp.lt.s32.totalorder %s31, 0
          %s293 = scalar_select %p292, %s31, 0
          %s294 = scalar_lea.vmem %s2, %s293
        $region20: #{tpu_custom_call.1} parent=11 // pred_fallthru
          _
        // Predicated region
        $region21: #{tpu_custom_call.1} parent=11 // pred_check
          %p295 = pneg %p147
        $region22: #{tpu_custom_call.1} parent=11 // pred_check_branch
          %297 = sbr.rel (%p295) target = $region24
        $region23: #{tpu_custom_call.1} parent=11 // pred_region
          %p298 = scmp.lt.s32.totalorder %s31, 0
          %s299 = scalar_select %p298, %s31, 0
          %s300 = scalar_lea.vmem %s3, %s299
        $region24: #{tpu_custom_call.1} parent=11 // pred_fallthru
          _
        // Predicated region
        $region25: #{tpu_custom_call.1} parent=11 // pred_check
          %p301 = pneg %p203
        $region26: #{tpu_custom_call.1} parent=11 // pred_check_branch
          %303 = sbr.rel (%p301) target = $region28
        $region27: #{tpu_custom_call.1} parent=11 // pred_region
          %s304 = smul.u32 16, %s32
          %s306 = ssub.s32 1024, 1024
          %307 = vsyncadd [#allocation7], %s306
          %s308 = sadd.s32 %s31, %s304
          %s309 = smul.addr %s308, 64
          %s310 = scalar_lea.hbm %s5, %s309
          %s311 = sshll.u32 [#allocation9], 4
          %s312 = int_to_ptr.vmem [resolvable:$true] %s311
          %317 = dma.hbm_to_vmem [thread:$0]  %s310, 1024, %s312, [#allocation7], 64, 64, 4
        $region28: #{tpu_custom_call.1} parent=11 // pred_fallthru
          _
        // Predicated region
        $region29: #{tpu_custom_call.1} parent=11 // pred_check
          %p318 = pneg %p229
        $region30: #{tpu_custom_call.1} parent=11 // pred_check_branch
          %320 = sbr.rel (%p318) target = $region32
        $region31: #{tpu_custom_call.1} parent=11 // pred_region
          %p321 = scmp.lt.s32.totalorder %s31, 0
          %s322 = scalar_select %p321, %s31, 0
          %s323 = scalar_lea.vmem %s6, %s322
        $region32: #{tpu_custom_call.1} parent=11 // pred_fallthru
          _
      $region12: #{tpu_custom_call.1} parent=5 // pred_fallthru
        _
      %p324 = scmp.lt.s32.totalorder %s20, 2
      // Predicated region
      $region33: #{tpu_custom_call.1} parent=5 // pred_check
        %p325 = pneg %p324
      $region34: #{tpu_custom_call.1} parent=5 // pred_check_branch
        %327 = sbr.rel (%p325) target = $region36
      $region35: #{tpu_custom_call.1} parent=5 // pred_region
        // Predicated region
        $region37: #{tpu_custom_call.1} parent=35 // pred_check
          %p328 = pneg %p61
        $region38: #{tpu_custom_call.1} parent=35 // pred_check_branch
          %330 = sbr.rel (%p328) target = $region40
        $region39: #{tpu_custom_call.1} parent=35 // pred_region
          %s331 = sand.u32 %s20, 1
          %s332 = scalar_lea.sflag [#allocation4], %s331
          %s333 = sand.u32 %s51, 1
          %s334 = smul.addr %s333, 144
          %s335 = scalar_lea.vmem [#allocation3], %s334
          %s336 = smul.u32 4, %s27
          %s337 = smul.u32 9, %s29
          %s339 = ssub.s32 2304, 2304
          %340 = vsyncadd %s332, %s339
          %s341 = smul.addr %s336, 9
          %s342 = sadd.s32 %s337, %s341
          %s343 = smul.addr %s342, 64
          %s344 = scalar_lea.hbm %s0, %s343
          %s345 = sshll.u32 %s335, 4
          %s346 = int_to_ptr.vmem [resolvable:$true] %s345
          %351 = dma.hbm_to_vmem [thread:$0]  %s344, 2304, %s346, %s332, 576, 576, 36
        $region40: #{tpu_custom_call.1} parent=35 // pred_fallthru
          _
        // Predicated region
        $region41: #{tpu_custom_call.1} parent=35 // pred_check
          %p352 = pneg %p169
        $region42: #{tpu_custom_call.1} parent=35 // pred_check_branch
          %354 = sbr.rel (%p352) target = $region44
        $region43: #{tpu_custom_call.1} parent=35 // pred_region
          %s355 = sand.u32 %s20, 1
          %s356 = scalar_lea.sflag [#allocation4], %s355
          %s357 = sand.u32 %s159, 1
          %s358 = smul.addr %s357, 16
          %s359 = scalar_lea.vmem [#allocation8], %s358
          %s360 = smul.u32 4, %s27
          %s362 = ssub.s32 256, 256
          %363 = vsyncadd %s356, %s362
          %s364 = sadd.s32 %s29, %s360
          %s365 = smul.addr %s364, 64
          %s366 = scalar_lea.hbm %s4, %s365
          %s367 = sshll.u32 %s359, 4
          %s368 = int_to_ptr.vmem [resolvable:$true] %s367
          %373 = dma.hbm_to_vmem [thread:$0]  %s366, 256, %s368, %s356, 64, 64, 4
        $region44: #{tpu_custom_call.1} parent=35 // pred_fallthru
          _
      $region36: #{tpu_custom_call.1} parent=5 // pred_fallthru
        _
      %p374 = scmp.le.s32.totalorder 1, %s20
      %p375 = scmp.lt.s32.totalorder %s20, 3
      %p376 = pnand %p374, %p375
      %p377 = pneg %p376
      // Predicated region
      $region45: #{tpu_custom_call.1} parent=5 // pred_check
        _
      $region46: #{tpu_custom_call.1} parent=5 // pred_check_branch
        %379 = sbr.rel (%p376) target = $region48
      $region47: #{tpu_custom_call.1} parent=5 // pred_region
        %s380 = ssub.s32 %s20, 1
        %s381 = sand.u32 %s25, 1
        %s382 = scalar_lea.sflag [#allocation4], %s381
        %s383 = sand.u32 %s54, 1
        %s384 = smul.addr %s383, 144
        %s385 = scalar_lea.vmem [#allocation3], %s384
        // Predicated region
        $region49: #{tpu_custom_call.1} parent=47 // pred_check
          %p386 = pneg %p67
        $region50: #{tpu_custom_call.1} parent=47 // pred_check_branch
          %388 = sbr.rel (%p386) target = $region52
        $region51: #{tpu_custom_call.1} parent=47 // pred_region
          %389 = dma.done %s382, 2304
        $region52: #{tpu_custom_call.1} parent=47 // pred_fallthru
          _
        // Predicated region
        $region53: #{tpu_custom_call.1} parent=47 // pred_check
          %p390 = pneg %p95
        $region54: #{tpu_custom_call.1} parent=47 // pred_check_branch
          %392 = sbr.rel (%p390) target = $region56
        $region55: #{tpu_custom_call.1} parent=47 // pred_region
          %393 = dma.done [#allocation7], 9216
        $region56: #{tpu_custom_call.1} parent=47 // pred_fallthru
          _
        %s394 = sand.u32 %s25, 1
        %s395 = scalar_lea.sflag [#allocation4], %s394
        %s396 = sand.u32 %s162, 1
        %s397 = smul.addr %s396, 16
        %s398 = scalar_lea.vmem [#allocation8], %s397
        // Predicated region
        $region57: #{tpu_custom_call.1} parent=47 // pred_check
          %p399 = pneg %p175
        $region58: #{tpu_custom_call.1} parent=47 // pred_check_branch
          %401 = sbr.rel (%p399) target = $region60
        $region59: #{tpu_custom_call.1} parent=47 // pred_region
          %402 = dma.done %s395, 256
        $region60: #{tpu_custom_call.1} parent=47 // pred_fallthru
          _
        // Predicated region
        $region61: #{tpu_custom_call.1} parent=47 // pred_check
          %p403 = pneg %p203
        $region62: #{tpu_custom_call.1} parent=47 // pred_check_branch
          %405 = sbr.rel (%p403) target = $region64
        $region63: #{tpu_custom_call.1} parent=47 // pred_region
          %406 = dma.done [#allocation7], 1024
        $region64: #{tpu_custom_call.1} parent=47 // pred_fallthru
          _
        %s407 = sand.u32 %s25, 1
        %s408 = scalar_lea.sflag [#allocation4], %s407
        %s409 = sand.u32 %s54, 1
        %s410 = smul.addr %s409, 144
        %s411 = scalar_lea.vmem [#allocation3], %s410
        %p412 = pneg %p67
        %p413 = pneg %p64
        %p414 = pneg %p95
        %p415 = pneg %p92
        %p416 = scmp.lt.s32.totalorder %s31, 0
        %s417 = scalar_select %p416, %s31, 0
        %s418 = scalar_lea.vmem %s2, %s417
        %p419 = pneg %p121
        %p420 = pneg %p118
        %p421 = scmp.lt.s32.totalorder %s31, 0
        %s422 = scalar_select %p421, %s31, 0
        %s423 = scalar_lea.vmem %s3, %s422
        %p424 = pneg %p147
        %p425 = pneg %p144
        %s426 = sand.u32 %s25, 1
        %s427 = scalar_lea.sflag [#allocation4], %s426
        %s428 = sand.u32 %s162, 1
        %s429 = smul.addr %s428, 16
        %s430 = scalar_lea.vmem [#allocation8], %s429
        %p431 = pneg %p175
        %p432 = pneg %p172
        %p433 = pneg %p203
        %p434 = pneg %p200
        %p435 = scmp.lt.s32.totalorder %s31, 0
        %s436 = scalar_select %p435, %s31, 0
        %s437 = scalar_lea.vmem %s6, %s436
        %p438 = pneg %p229
        %p439 = pneg %p226
        %p440 = pneg %p257
        %p441 = pneg %p254
        %s442 = sand.u32 %s244, 1
        %s443 = scalar_lea.sflag [#allocation5], %s442
        %s444 = sand.u32 %s244, 1
        %s445 = smul.addr %s444, 32
        %s446 = scalar_lea.vmem [#allocation10], %s445
        %s447 = smul.u32 4, %s30
        %s448 = smul.u32 9, %s32
        %s449 = smul.u32 144, %s32
        %p450 = scmp.lt.s32.totalorder %s31, 0
        %s451 = scalar_select %p450, %s31, 0
        %s452 = scalar_lea.vmem %s2, %s451
        %p453 = scmp.lt.s32.totalorder %s31, 0
        %s454 = scalar_select %p453, %s31, 0
        %s455 = scalar_lea.vmem %s3, %s454
        %s456 = smul.u32 4, %s30
        %s457 = smul.u32 16, %s32
        %p458 = scmp.lt.s32.totalorder %s31, 0
        %s459 = scalar_select %p458, %s31, 0
        %s460 = scalar_lea.vmem %s6, %s459
        %s461 = smul.u32 4, %s30
        %p463 = scmp.eq.s32.totalorder %s32, 0
        // Predicated region
        $region65: #{tpu_custom_call.1} parent=47 // pred_check
          %p464 = pneg %p463
        $region66: #{tpu_custom_call.1} parent=47 // pred_check_branch
          %466 = sbr.rel (%p464) target = $region68
        $region67: #{tpu_custom_call.1} parent=47 // pred_region
          %467 = vst [vmem:[%s446] sm:$0xff] 0.0
          %468 = vst [vmem:[%s446 + $0x8] sm:$0xff] 0.0
          %469 = vst [vmem:[%s446 + $0x10] sm:$0xff] 0.0
          %470 = vst [vmem:[%s446 + $0x18] sm:$0xff] 0.0
          %471 = vst [vmem:[#allocation2] sm:$0xff] 0.0
          %472 = vst [vmem:[#allocation2 + $0x8] sm:$0xff] 0.0
          %473 = vst [vmem:[#allocation2 + $0x10] sm:$0xff] 0.0
          %474 = vst [vmem:[#allocation2 + $0x18] sm:$0xff] 0.0
        $region68: #{tpu_custom_call.1} parent=47 // pred_fallthru
          _
        %v475 = vld [vmem:[%s446] sm:$0xff]
        %v476 = vld [vmem:[%s446 + $0x8] sm:$0xff]
        %v477 = vld [vmem:[%s446 + $0x10] sm:$0xff]
        %v478 = vld [vmem:[%s446 + $0x18] sm:$0xff]
        %v479 = vld [vmem:[%s385] sm:$0xff]
        %v480 = vld [vmem:[%s385 + $0x8] sm:$0xff]
        %v481 = vld [vmem:[%s385 + $0x10] sm:$0xff]
        %v482 = vld [vmem:[%s385 + $0x18] sm:$0xff]
        %v483 = vld [vmem:[%s385 + $0x20] sm:$0xf]
        %v484 = vld [vmem:[%s385 + $0x24] sm:$0xff]
        %v485 = vld [vmem:[%s385 + $0x2c] sm:$0xff]
        %v486 = vld [vmem:[%s385 + $0x34] sm:$0xff]
        %v487 = vld [vmem:[%s385 + $0x3c] sm:$0xff]
        %v488 = vld [vmem:[%s385 + $0x44] sm:$0xf]
        %v489 = vld [vmem:[%s385 + $0x48] sm:$0xff]
        %v490 = vld [vmem:[%s385 + $0x50] sm:$0xff]
        %v491 = vld [vmem:[%s385 + $0x58] sm:$0xff]
        %v492 = vld [vmem:[%s385 + $0x60] sm:$0xff]
        %v493 = vld [vmem:[%s385 + $0x68] sm:$0xf]
        %v494 = vld [vmem:[%s385 + $0x6c] sm:$0xff]
        %v495 = vld [vmem:[%s385 + $0x74] sm:$0xff]
        %v496 = vld [vmem:[%s385 + $0x7c] sm:$0xff]
        %v497 = vld [vmem:[%s385 + $0x84] sm:$0xff]
        %v498 = vld [vmem:[%s385 + $0x8c] sm:$0xf]
        %v499 = vld [vmem:[#allocation6] sm:$0xf]
        %v500 = vld [vmem:[#allocation6 + $0x4] sm:$0xf]
        %v501 = vld [vmem:[#allocation6 + $0x8] sm:$0xf]
        %v502 = vld [vmem:[#allocation6 + $0xc] sm:$0xf]
        %v503 = vld [vmem:[#allocation6 + $0x10] sm:$0xf]
        %v504 = vld [vmem:[#allocation6 + $0x14] sm:$0xf]
        %v505 = vld [vmem:[#allocation6 + $0x18] sm:$0xf]
        %v506 = vld [vmem:[#allocation6 + $0x1c] sm:$0xf]
        %v507 = vld [vmem:[#allocation6 + $0x20] sm:$0xf]
        %v508 = vld [vmem:[#allocation6 + $0x24] sm:$0xf]
        %v509 = vld [vmem:[#allocation6 + $0x28] sm:$0xf]
        %v510 = vld [vmem:[#allocation6 + $0x2c] sm:$0xf]
        %v511 = vld [vmem:[#allocation6 + $0x30] sm:$0xf]
        %v512 = vld [vmem:[#allocation6 + $0x34] sm:$0xf]
        %v513 = vld [vmem:[#allocation6 + $0x38] sm:$0xf]
        %v514 = vld [vmem:[#allocation6 + $0x3c] sm:$0xf]
        %v515 = vld [vmem:[#allocation6 + $0x40] sm:$0xf]
        %v516 = vld [vmem:[#allocation6 + $0x44] sm:$0xf]
        %v517 = vld [vmem:[#allocation6 + $0x48] sm:$0xf]
        %v518 = vld [vmem:[#allocation6 + $0x4c] sm:$0xf]
        %v519 = vld [vmem:[#allocation6 + $0x50] sm:$0xf]
        %v520 = vld [vmem:[#allocation6 + $0x54] sm:$0xf]
        %v521 = vld [vmem:[#allocation6 + $0x58] sm:$0xf]
        %v522 = vld [vmem:[#allocation6 + $0x5c] sm:$0xf]
        %v523 = vld [vmem:[#allocation6 + $0x60] sm:$0xf]
        %v524 = vld [vmem:[#allocation6 + $0x64] sm:$0xf]
        %v525 = vld [vmem:[#allocation6 + $0x68] sm:$0xf]
        %v526 = vld [vmem:[#allocation6 + $0x6c] sm:$0xf]
        %v527 = vld [vmem:[#allocation6 + $0x70] sm:$0xf]
        %v528 = vld [vmem:[#allocation6 + $0x74] sm:$0xf]
        %v529 = vld [vmem:[#allocation6 + $0x78] sm:$0xf]
        %v530 = vld [vmem:[#allocation6 + $0x7c] sm:$0xf]
        %v531 = vld [vmem:[#allocation6 + $0x80] sm:$0xf]
        %v532 = vld [vmem:[#allocation6 + $0x84] sm:$0xf]
        %v533 = vld [vmem:[#allocation6 + $0x88] sm:$0xf]
        %v534 = vld [vmem:[#allocation6 + $0x8c] sm:$0xf]
        %v535 = vld [vmem:[#allocation6 + $0x90] sm:$0xf]
        %v536 = vld [vmem:[#allocation6 + $0x94] sm:$0xf]
        %v537 = vld [vmem:[#allocation6 + $0x98] sm:$0xf]
        %v538 = vld [vmem:[#allocation6 + $0x9c] sm:$0xf]
        %v539 = vld [vmem:[#allocation6 + $0xa0] sm:$0xf]
        %v540 = vld [vmem:[#allocation6 + $0xa4] sm:$0xf]
        %v541 = vld [vmem:[#allocation6 + $0xa8] sm:$0xf]
        %v542 = vld [vmem:[#allocation6 + $0xac] sm:$0xf]
        %v543 = vld [vmem:[#allocation6 + $0xb0] sm:$0xf]
        %v544 = vld [vmem:[#allocation6 + $0xb4] sm:$0xf]
        %v545 = vld [vmem:[#allocation6 + $0xb8] sm:$0xf]
        %v546 = vld [vmem:[#allocation6 + $0xbc] sm:$0xf]
        %v547 = vld [vmem:[#allocation6 + $0xc0] sm:$0xf]
        %v548 = vld [vmem:[#allocation6 + $0xc4] sm:$0xf]
        %v549 = vld [vmem:[#allocation6 + $0xc8] sm:$0xf]
        %v550 = vld [vmem:[#allocation6 + $0xcc] sm:$0xf]
        %v551 = vld [vmem:[#allocation6 + $0xd0] sm:$0xf]
        %v552 = vld [vmem:[#allocation6 + $0xd4] sm:$0xf]
        %v553 = vld [vmem:[#allocation6 + $0xd8] sm:$0xf]
        %v554 = vld [vmem:[#allocation6 + $0xdc] sm:$0xf]
        %v555 = vld [vmem:[#allocation6 + $0xe0] sm:$0xf]
        %v556 = vld [vmem:[#allocation6 + $0xe4] sm:$0xf]
        %v557 = vld [vmem:[#allocation6 + $0xe8] sm:$0xf]
        %v558 = vld [vmem:[#allocation6 + $0xec] sm:$0xf]
        %v559 = vld [vmem:[#allocation6 + $0xf0] sm:$0xf]
        %v560 = vld [vmem:[#allocation6 + $0xf4] sm:$0xf]
        %v561 = vld [vmem:[#allocation6 + $0xf8] sm:$0xf]
        %v562 = vld [vmem:[#allocation6 + $0xfc] sm:$0xf]
        %v563 = vld [vmem:[#allocation6 + $0x100] sm:$0xf]
        %v564 = vld [vmem:[#allocation6 + $0x104] sm:$0xf]
        %v565 = vld [vmem:[#allocation6 + $0x108] sm:$0xf]
        %v566 = vld [vmem:[#allocation6 + $0x10c] sm:$0xf]
        %v567 = vld [vmem:[#allocation6 + $0x110] sm:$0xf]
        %v568 = vld [vmem:[#allocation6 + $0x114] sm:$0xf]
        %v569 = vld [vmem:[#allocation6 + $0x118] sm:$0xf]
        %v570 = vld [vmem:[#allocation6 + $0x11c] sm:$0xf]
        %v571 = vld [vmem:[#allocation6 + $0x120] sm:$0xf]
        %v572 = vld [vmem:[#allocation6 + $0x124] sm:$0xf]
        %v573 = vld [vmem:[#allocation6 + $0x128] sm:$0xf]
        %v574 = vld [vmem:[#allocation6 + $0x12c] sm:$0xf]
        %v575 = vld [vmem:[#allocation6 + $0x130] sm:$0xf]
        %v576 = vld [vmem:[#allocation6 + $0x134] sm:$0xf]
        %v577 = vld [vmem:[#allocation6 + $0x138] sm:$0xf]
        %v578 = vld [vmem:[#allocation6 + $0x13c] sm:$0xf]
        %v579 = vld [vmem:[#allocation6 + $0x140] sm:$0xf]
        %v580 = vld [vmem:[#allocation6 + $0x144] sm:$0xf]
        %v581 = vld [vmem:[#allocation6 + $0x148] sm:$0xf]
        %v582 = vld [vmem:[#allocation6 + $0x14c] sm:$0xf]
        %v583 = vld [vmem:[#allocation6 + $0x150] sm:$0xf]
        %v584 = vld [vmem:[#allocation6 + $0x154] sm:$0xf]
        %v585 = vld [vmem:[#allocation6 + $0x158] sm:$0xf]
        %v586 = vld [vmem:[#allocation6 + $0x15c] sm:$0xf]
        %v587 = vld [vmem:[#allocation6 + $0x160] sm:$0xf]
        %v588 = vld [vmem:[#allocation6 + $0x164] sm:$0xf]
        %v589 = vld [vmem:[#allocation6 + $0x168] sm:$0xf]
        %v590 = vld [vmem:[#allocation6 + $0x16c] sm:$0xf]
        %v591 = vld [vmem:[#allocation6 + $0x170] sm:$0xf]
        %v592 = vld [vmem:[#allocation6 + $0x174] sm:$0xf]
        %v593 = vld [vmem:[#allocation6 + $0x178] sm:$0xf]
        %v594 = vld [vmem:[#allocation6 + $0x17c] sm:$0xf]
        %v595 = vld [vmem:[#allocation6 + $0x180] sm:$0xf]
        %v596 = vld [vmem:[#allocation6 + $0x184] sm:$0xf]
        %v597 = vld [vmem:[#allocation6 + $0x188] sm:$0xf]
        %v598 = vld [vmem:[#allocation6 + $0x18c] sm:$0xf]
        %v599 = vld [vmem:[#allocation6 + $0x190] sm:$0xf]
        %v600 = vld [vmem:[#allocation6 + $0x194] sm:$0xf]
        %v601 = vld [vmem:[#allocation6 + $0x198] sm:$0xf]
        %v602 = vld [vmem:[#allocation6 + $0x19c] sm:$0xf]
        %v603 = vld [vmem:[#allocation6 + $0x1a0] sm:$0xf]
        %v604 = vld [vmem:[#allocation6 + $0x1a4] sm:$0xf]
        %v605 = vld [vmem:[#allocation6 + $0x1a8] sm:$0xf]
        %v606 = vld [vmem:[#allocation6 + $0x1ac] sm:$0xf]
        %v607 = vld [vmem:[#allocation6 + $0x1b0] sm:$0xf]
        %v608 = vld [vmem:[#allocation6 + $0x1b4] sm:$0xf]
        %v609 = vld [vmem:[#allocation6 + $0x1b8] sm:$0xf]
        %v610 = vld [vmem:[#allocation6 + $0x1bc] sm:$0xf]
        %v611 = vld [vmem:[#allocation6 + $0x1c0] sm:$0xf]
        %v612 = vld [vmem:[#allocation6 + $0x1c4] sm:$0xf]
        %v613 = vld [vmem:[#allocation6 + $0x1c8] sm:$0xf]
        %v614 = vld [vmem:[#allocation6 + $0x1cc] sm:$0xf]
        %v615 = vld [vmem:[#allocation6 + $0x1d0] sm:$0xf]
        %v616 = vld [vmem:[#allocation6 + $0x1d4] sm:$0xf]
        %v617 = vld [vmem:[#allocation6 + $0x1d8] sm:$0xf]
        %v618 = vld [vmem:[#allocation6 + $0x1dc] sm:$0xf]
        %v619 = vld [vmem:[#allocation6 + $0x1e0] sm:$0xf]
        %v620 = vld [vmem:[#allocation6 + $0x1e4] sm:$0xf]
        %v621 = vld [vmem:[#allocation6 + $0x1e8] sm:$0xf]
        %v622 = vld [vmem:[#allocation6 + $0x1ec] sm:$0xf]
        %v623 = vld [vmem:[#allocation6 + $0x1f0] sm:$0xf]
        %v624 = vld [vmem:[#allocation6 + $0x1f4] sm:$0xf]
        %v625 = vld [vmem:[#allocation6 + $0x1f8] sm:$0xf]
        %v626 = vld [vmem:[#allocation6 + $0x1fc] sm:$0xf]
        %v627 = vld [vmem:[#allocation6 + $0x200] sm:$0xf]
        %v628 = vld [vmem:[#allocation6 + $0x204] sm:$0xf]
        %v629 = vld [vmem:[#allocation6 + $0x208] sm:$0xf]
        %v630 = vld [vmem:[#allocation6 + $0x20c] sm:$0xf]
        %v631 = vld [vmem:[#allocation6 + $0x210] sm:$0xf]
        %v632 = vld [vmem:[#allocation6 + $0x214] sm:$0xf]
        %v633 = vld [vmem:[#allocation6 + $0x218] sm:$0xf]
        %v634 = vld [vmem:[#allocation6 + $0x21c] sm:$0xf]
        %v635 = vld [vmem:[#allocation6 + $0x220] sm:$0xf]
        %v636 = vld [vmem:[#allocation6 + $0x224] sm:$0xf]
        %v637 = vld [vmem:[#allocation6 + $0x228] sm:$0xf]
        %v638 = vld [vmem:[#allocation6 + $0x22c] sm:$0xf]
        %v639 = vld [vmem:[#allocation6 + $0x230] sm:$0xf]
        %v640 = vld [vmem:[#allocation6 + $0x234] sm:$0xf]
        %v641 = vld [vmem:[#allocation6 + $0x238] sm:$0xf]
        %v642 = vld [vmem:[#allocation6 + $0x23c] sm:$0xf]
        %v663 = vunpack.c.l.b16 %v479
        %v664 = vunpack.c.h.b16 %v479
        %v665 = vunpack.c.l.b16 %v480
        %v666 = vunpack.c.h.b16 %v480
        %v667 = vunpack.c.l.b16 %v481
        %v668 = vunpack.c.h.b16 %v481
        %v669 = vunpack.c.l.b16 %v482
        %v670 = vunpack.c.h.b16 %v482
        %v671 = vunpack.c.l.b16 %v483
        %v672 = vunpack.c.l.b16 %v484
        %v673 = vunpack.c.h.b16 %v484
        %v674 = vunpack.c.l.b16 %v485
        %v675 = vunpack.c.h.b16 %v485
        %v676 = vunpack.c.l.b16 %v486
        %v677 = vunpack.c.h.b16 %v486
        %v678 = vunpack.c.l.b16 %v487
        %v679 = vunpack.c.h.b16 %v487
        %v680 = vunpack.c.l.b16 %v488
        %v681 = vunpack.c.l.b16 %v489
        %v682 = vunpack.c.h.b16 %v489
        %v683 = vunpack.c.l.b16 %v490
        %v684 = vunpack.c.h.b16 %v490
        %v685 = vunpack.c.l.b16 %v491
        %v686 = vunpack.c.h.b16 %v491
        %v687 = vunpack.c.l.b16 %v492
        %v688 = vunpack.c.h.b16 %v492
        %v689 = vunpack.c.l.b16 %v493
        %v690 = vunpack.c.l.b16 %v494
        %v691 = vunpack.c.h.b16 %v494
        %v692 = vunpack.c.l.b16 %v495
        %v693 = vunpack.c.h.b16 %v495
        %v694 = vunpack.c.l.b16 %v496
        %v695 = vunpack.c.h.b16 %v496
        %v696 = vunpack.c.l.b16 %v497
        %v697 = vunpack.c.h.b16 %v497
        %v698 = vunpack.c.l.b16 %v498
        %v699 = vpack.c.b16 %v672, %v663
        %v700 = vpack.c.b16 %v673, %v664
        %v701 = vpack.c.b16 %v674, %v665
        %v702 = vpack.c.b16 %v675, %v666
        %v703 = vpack.c.b16 %v676, %v667
        %v704 = vpack.c.b16 %v677, %v668
        %v705 = vpack.c.b16 %v678, %v669
        %v706 = vpack.c.b16 %v679, %v670
        %v707 = vpack.c.b16 %v680, %v671
        %v708 = vpack.c.b16 %v690, %v681
        %v709 = vpack.c.b16 %v691, %v682
        %v710 = vpack.c.b16 %v692, %v683
        %v711 = vpack.c.b16 %v693, %v684
        %v712 = vpack.c.b16 %v694, %v685
        %v713 = vpack.c.b16 %v695, %v686
        %v714 = vpack.c.b16 %v696, %v687
        %v715 = vpack.c.b16 %v697, %v688
        %v716 = vpack.c.b16 %v698, %v689
        %v879 = vunpack.c.l.b16 %v499
        %v880 = vunpack.c.l.b16 %v500
        %v881 = vunpack.c.l.b16 %v501
        %v882 = vunpack.c.l.b16 %v502
        %v883 = vunpack.c.l.b16 %v503
        %v884 = vunpack.c.l.b16 %v504
        %v885 = vunpack.c.l.b16 %v505
        %v886 = vunpack.c.l.b16 %v506
        %v887 = vunpack.c.l.b16 %v507
        %v888 = vunpack.c.l.b16 %v508
        %v889 = vunpack.c.l.b16 %v509
        %v890 = vunpack.c.l.b16 %v510
        %v891 = vunpack.c.l.b16 %v511
        %v892 = vunpack.c.l.b16 %v512
        %v893 = vunpack.c.l.b16 %v513
        %v894 = vunpack.c.l.b16 %v514
        %v895 = vunpack.c.l.b16 %v515
        %v896 = vunpack.c.l.b16 %v516
        %v897 = vunpack.c.l.b16 %v517
        %v898 = vunpack.c.l.b16 %v518
        %v899 = vunpack.c.l.b16 %v519
        %v900 = vunpack.c.l.b16 %v520
        %v901 = vunpack.c.l.b16 %v521
        %v902 = vunpack.c.l.b16 %v522
        %v903 = vunpack.c.l.b16 %v523
        %v904 = vunpack.c.l.b16 %v524
        %v905 = vunpack.c.l.b16 %v525
        %v906 = vunpack.c.l.b16 %v526
        %v907 = vunpack.c.l.b16 %v527
        %v908 = vunpack.c.l.b16 %v528
        %v909 = vunpack.c.l.b16 %v529
        %v910 = vunpack.c.l.b16 %v530
        %v911 = vunpack.c.l.b16 %v531
        %v912 = vunpack.c.l.b16 %v532
        %v913 = vunpack.c.l.b16 %v533
        %v914 = vunpack.c.l.b16 %v534
        %v915 = vunpack.c.l.b16 %v535
        %v916 = vunpack.c.l.b16 %v536
        %v917 = vunpack.c.l.b16 %v537
        %v918 = vunpack.c.l.b16 %v538
        %v919 = vunpack.c.l.b16 %v539
        %v920 = vunpack.c.l.b16 %v540
        %v921 = vunpack.c.l.b16 %v541
        %v922 = vunpack.c.l.b16 %v542
        %v923 = vunpack.c.l.b16 %v543
        %v924 = vunpack.c.l.b16 %v544
        %v925 = vunpack.c.l.b16 %v545
        %v926 = vunpack.c.l.b16 %v546
        %v927 = vunpack.c.l.b16 %v547
        %v928 = vunpack.c.l.b16 %v548
        %v929 = vunpack.c.l.b16 %v549
        %v930 = vunpack.c.l.b16 %v550
        %v931 = vunpack.c.l.b16 %v551
        %v932 = vunpack.c.l.b16 %v552
        %v933 = vunpack.c.l.b16 %v553
        %v934 = vunpack.c.l.b16 %v554
        %v935 = vunpack.c.l.b16 %v555
        %v936 = vunpack.c.l.b16 %v556
        %v937 = vunpack.c.l.b16 %v557
        %v938 = vunpack.c.l.b16 %v558
        %v939 = vunpack.c.l.b16 %v559
        %v940 = vunpack.c.l.b16 %v560
        %v941 = vunpack.c.l.b16 %v561
        %v942 = vunpack.c.l.b16 %v562
        %v943 = vunpack.c.l.b16 %v563
        %v944 = vunpack.c.l.b16 %v564
        %v945 = vunpack.c.l.b16 %v565
        %v946 = vunpack.c.l.b16 %v566
        %v947 = vunpack.c.l.b16 %v567
        %v948 = vunpack.c.l.b16 %v568
        %v949 = vunpack.c.l.b16 %v569
        %v950 = vunpack.c.l.b16 %v570
        %v951 = vunpack.c.l.b16 %v571
        %v952 = vunpack.c.l.b16 %v572
        %v953 = vunpack.c.l.b16 %v573
        %v954 = vunpack.c.l.b16 %v574
        %v955 = vunpack.c.l.b16 %v575
        %v956 = vunpack.c.l.b16 %v576
        %v957 = vunpack.c.l.b16 %v577
        %v958 = vunpack.c.l.b16 %v578
        %v959 = vunpack.c.l.b16 %v579
        %v960 = vunpack.c.l.b16 %v580
        %v961 = vunpack.c.l.b16 %v581
        %v962 = vunpack.c.l.b16 %v582
        %v963 = vunpack.c.l.b16 %v583
        %v964 = vunpack.c.l.b16 %v584
        %v965 = vunpack.c.l.b16 %v585
        %v966 = vunpack.c.l.b16 %v586
        %v967 = vunpack.c.l.b16 %v587
        %v968 = vunpack.c.l.b16 %v588
        %v969 = vunpack.c.l.b16 %v589
        %v970 = vunpack.c.l.b16 %v590
        %v971 = vunpack.c.l.b16 %v591
        %v972 = vunpack.c.l.b16 %v592
        %v973 = vunpack.c.l.b16 %v593
        %v974 = vunpack.c.l.b16 %v594
        %v975 = vunpack.c.l.b16 %v595
        %v976 = vunpack.c.l.b16 %v596
        %v977 = vunpack.c.l.b16 %v597
        %v978 = vunpack.c.l.b16 %v598
        %v979 = vunpack.c.l.b16 %v599
        %v980 = vunpack.c.l.b16 %v600
        %v981 = vunpack.c.l.b16 %v601
        %v982 = vunpack.c.l.b16 %v602
        %v983 = vunpack.c.l.b16 %v603
        %v984 = vunpack.c.l.b16 %v604
        %v985 = vunpack.c.l.b16 %v605
        %v986 = vunpack.c.l.b16 %v606
        %v987 = vunpack.c.l.b16 %v607
        %v988 = vunpack.c.l.b16 %v608
        %v989 = vunpack.c.l.b16 %v609
        %v990 = vunpack.c.l.b16 %v610
        %v991 = vunpack.c.l.b16 %v611
        %v992 = vunpack.c.l.b16 %v612
        %v993 = vunpack.c.l.b16 %v613
        %v994 = vunpack.c.l.b16 %v614
        %v995 = vunpack.c.l.b16 %v615
        %v996 = vunpack.c.l.b16 %v616
        %v997 = vunpack.c.l.b16 %v617
        %v998 = vunpack.c.l.b16 %v618
        %v999 = vunpack.c.l.b16 %v619
        %v1000 = vunpack.c.l.b16 %v620
        %v1001 = vunpack.c.l.b16 %v621
        %v1002 = vunpack.c.l.b16 %v622
        %v1003 = vunpack.c.l.b16 %v623
        %v1004 = vunpack.c.l.b16 %v624
        %v1005 = vunpack.c.l.b16 %v625
        %v1006 = vunpack.c.l.b16 %v626
        %v1007 = vunpack.c.l.b16 %v627
        %v1008 = vunpack.c.l.b16 %v628
        %v1009 = vunpack.c.l.b16 %v629
        %v1010 = vunpack.c.l.b16 %v630
        %v1011 = vunpack.c.l.b16 %v631
        %v1012 = vunpack.c.l.b16 %v632
        %v1013 = vunpack.c.l.b16 %v633
        %v1014 = vunpack.c.l.b16 %v634
        %v1015 = vunpack.c.l.b16 %v635
        %v1016 = vunpack.c.l.b16 %v636
        %v1017 = vunpack.c.l.b16 %v637
        %v1018 = vunpack.c.l.b16 %v638
        %v1019 = vunpack.c.l.b16 %v639
        %v1020 = vunpack.c.l.b16 %v640
        %v1021 = vunpack.c.l.b16 %v641
        %v1022 = vunpack.c.l.b16 %v642
        %v1023 = vpack.c.b16 %v880, %v879
        %v1024 = vpack.c.b16 %v882, %v881
        %v1025 = vpack.c.b16 %v884, %v883
        %v1026 = vpack.c.b16 %v886, %v885
        %v1027 = vpack.c.b16 %v888, %v887
        %v1028 = vpack.c.b16 %v890, %v889
        %v1029 = vpack.c.b16 %v892, %v891
        %v1030 = vpack.c.b16 %v894, %v893
        %v1031 = vpack.c.b16 %v896, %v895
        %v1032 = vpack.c.b16 %v898, %v897
        %v1033 = vpack.c.b16 %v900, %v899
        %v1034 = vpack.c.b16 %v902, %v901
        %v1035 = vpack.c.b16 %v904, %v903
        %v1036 = vpack.c.b16 %v906, %v905
        %v1037 = vpack.c.b16 %v908, %v907
        %v1038 = vpack.c.b16 %v910, %v909
        %v1039 = vpack.c.b16 %v912, %v911
        %v1040 = vpack.c.b16 %v914, %v913
        %v1041 = vpack.c.b16 %v916, %v915
        %v1042 = vpack.c.b16 %v918, %v917
        %v1043 = vpack.c.b16 %v920, %v919
        %v1044 = vpack.c.b16 %v922, %v921
        %v1045 = vpack.c.b16 %v924, %v923
        %v1046 = vpack.c.b16 %v926, %v925
        %v1047 = vpack.c.b16 %v928, %v927
        %v1048 = vpack.c.b16 %v930, %v929
        %v1049 = vpack.c.b16 %v932, %v931
        %v1050 = vpack.c.b16 %v934, %v933
        %v1051 = vpack.c.b16 %v936, %v935
        %v1052 = vpack.c.b16 %v938, %v937
        %v1053 = vpack.c.b16 %v940, %v939
        %v1054 = vpack.c.b16 %v942, %v941
        %v1055 = vpack.c.b16 %v944, %v943
        %v1056 = vpack.c.b16 %v946, %v945
        %v1057 = vpack.c.b16 %v948, %v947
        %v1058 = vpack.c.b16 %v950, %v949
        %v1059 = vpack.c.b16 %v952, %v951
        %v1060 = vpack.c.b16 %v954, %v953
        %v1061 = vpack.c.b16 %v956, %v955
        %v1062 = vpack.c.b16 %v958, %v957
        %v1063 = vpack.c.b16 %v960, %v959
        %v1064 = vpack.c.b16 %v962, %v961
        %v1065 = vpack.c.b16 %v964, %v963
        %v1066 = vpack.c.b16 %v966, %v965
        %v1067 = vpack.c.b16 %v968, %v967
        %v1068 = vpack.c.b16 %v970, %v969
        %v1069 = vpack.c.b16 %v972, %v971
        %v1070 = vpack.c.b16 %v974, %v973
        %v1071 = vpack.c.b16 %v976, %v975
        %v1072 = vpack.c.b16 %v978, %v977
        %v1073 = vpack.c.b16 %v980, %v979
        %v1074 = vpack.c.b16 %v982, %v981
        %v1075 = vpack.c.b16 %v984, %v983
        %v1076 = vpack.c.b16 %v986, %v985
        %v1077 = vpack.c.b16 %v988, %v987
        %v1078 = vpack.c.b16 %v990, %v989
        %v1079 = vpack.c.b16 %v992, %v991
        %v1080 = vpack.c.b16 %v994, %v993
        %v1081 = vpack.c.b16 %v996, %v995
        %v1082 = vpack.c.b16 %v998, %v997
        %v1083 = vpack.c.b16 %v1000, %v999
        %v1084 = vpack.c.b16 %v1002, %v1001
        %v1085 = vpack.c.b16 %v1004, %v1003
        %v1086 = vpack.c.b16 %v1006, %v1005
        %v1087 = vpack.c.b16 %v1008, %v1007
        %v1088 = vpack.c.b16 %v1010, %v1009
        %v1089 = vpack.c.b16 %v1012, %v1011
        %v1090 = vpack.c.b16 %v1014, %v1013
        %v1091 = vpack.c.b16 %v1016, %v1015
        %v1092 = vpack.c.b16 %v1018, %v1017
        %v1093 = vpack.c.b16 %v1020, %v1019
        %v1094 = vpack.c.b16 %v1022, %v1021
        %1167 = vmatprep.subr.bf16.mxu0 0
        %1168 = vmatpush1.bf16.msra.mxu0 %v1023
        %1169 = vmatprep.subr.bf16.mxu0 0
        %1170 = vmatpush1.bf16.msra.mxu0 %v1024
        %1171 = vmatprep.subr.bf16.mxu0 0
        %1172 = vmatpush1.bf16.msra.mxu0 %v1025
        %1173 = vmatprep.subr.bf16.mxu0 0
        %1174 = vmatpush1.bf16.msra.mxu0 %v1026
        %1175 = vmatprep.subr.bf16.mxu0 0
        %1176 = vmatpush1.bf16.msra.mxu0 %v1027
        %1177 = vmatprep.subr.bf16.mxu0 0
        %1178 = vmatpush1.bf16.msra.mxu0 %v1028
        %1179 = vmatprep.subr.bf16.mxu0 0
        %1180 = vmatpush1.bf16.msra.mxu0 %v1029
        %1181 = vmatprep.subr.bf16.mxu0 0
        %1182 = vmatpush1.bf16.msra.mxu0 %v1030
        %1183 = vmatprep.subr.bf16.mxu0 0
        %1184 = vmatpush1.bf16.msra.mxu0 %v1031
        %1185 = vmatprep.subr.bf16.mxu0 0
        %1186 = vmatpush1.bf16.msra.mxu0 %v1032
        %1187 = vmatprep.subr.bf16.mxu0 0
        %1188 = vmatpush1.bf16.msra.mxu0 %v1033
        %1189 = vmatprep.subr.bf16.mxu0 0
        %1190 = vmatpush1.bf16.msra.mxu0 %v1034
        %1191 = vmatprep.subr.bf16.mxu0 0
        %1192 = vmatpush1.bf16.msra.mxu0 %v1035
        %1193 = vmatprep.subr.bf16.mxu0 0
        %1194 = vmatpush1.bf16.msra.mxu0 %v1036
        %1195 = vmatprep.subr.bf16.mxu0 0
        %1196 = vmatpush1.bf16.msra.mxu0 %v1037
        %1197 = vmatprep.subr.bf16.mxu0 0
        %1198 = vmatpush1.bf16.msra.mxu0 %v1038
        %1199 = vmatprep.mubr.bf16.mxu0 %v700
        %1200 = vmatmul.mubr.bf16.gmra.mrb[0].mxu0 %v699
        %v1201 = vpop.f32.mrb[0].mxu0
        %v1202 = vadd.f32 0.0, %v1201
        %v1203 = vpop.f32.mrb[0].mxu0
        %v1204 = vpop.f32.mrb[0].mxu0
        %v1205 = vadd.f32 0.0, %v1204
        %v1206 = vpop.f32.mrb[0].mxu0
        %1207 = vmatprep.mubr.bf16.mxu0 %v709
        %1208 = vmatmul.mubr.bf16.gmra.mrb[0].mxu0 %v708
        %v1209 = vpop.f32.mrb[0].mxu0
        %v1210 = vadd.f32 0.0, %v1209
        %v1211 = vpop.f32.mrb[0].mxu0
        %v1212 = vpop.f32.mrb[0].mxu0
        %v1213 = vadd.f32 0.0, %v1212
        %v1214 = vpop.f32.mrb[0].mxu0
        %1215 = vdwg.mxu0
        %1216 = vmatprep.subr.bf16.mxu0 0
        %1217 = vmatpush1.bf16.msra.mxu0 %v1039
        %1218 = vmatprep.subr.bf16.mxu0 0
        %1219 = vmatpush1.bf16.msra.mxu0 %v1040
        %1220 = vmatprep.subr.bf16.mxu0 0
        %1221 = vmatpush1.bf16.msra.mxu0 %v1041
        %1222 = vmatprep.subr.bf16.mxu0 0
        %1223 = vmatpush1.bf16.msra.mxu0 %v1042
        %1224 = vmatprep.subr.bf16.mxu0 0
        %1225 = vmatpush1.bf16.msra.mxu0 %v1043
        %1226 = vmatprep.subr.bf16.mxu0 0
        %1227 = vmatpush1.bf16.msra.mxu0 %v1044
        %1228 = vmatprep.subr.bf16.mxu0 0
        %1229 = vmatpush1.bf16.msra.mxu0 %v1045
        %1230 = vmatprep.subr.bf16.mxu0 0
        %1231 = vmatpush1.bf16.msra.mxu0 %v1046
        %1232 = vmatprep.subr.bf16.mxu0 0
        %1233 = vmatpush1.bf16.msra.mxu0 %v1047
        %1234 = vmatprep.subr.bf16.mxu0 0
        %1235 = vmatpush1.bf16.msra.mxu0 %v1048
        %1236 = vmatprep.subr.bf16.mxu0 0
        %1237 = vmatpush1.bf16.msra.mxu0 %v1049
        %1238 = vmatprep.subr.bf16.mxu0 0
        %1239 = vmatpush1.bf16.msra.mxu0 %v1050
        %1240 = vmatprep.subr.bf16.mxu0 0
        %1241 = vmatpush1.bf16.msra.mxu0 %v1051
        %1242 = vmatprep.subr.bf16.mxu0 0
        %1243 = vmatpush1.bf16.msra.mxu0 %v1052
        %1244 = vmatprep.subr.bf16.mxu0 0
        %1245 = vmatpush1.bf16.msra.mxu0 %v1053
        %1246 = vmatprep.subr.bf16.mxu0 0
        %1247 = vmatpush1.bf16.msra.mxu0 %v1054
        %1248 = vmatprep.mubr.bf16.mxu0 %v702
        %1249 = vmatmul.mubr.bf16.gmra.mrb[0].mxu0 %v701
        %v1250 = vpop.f32.mrb[0].mxu0
        %v1251 = vadd.f32 %v1202, %v1250
        %v1252 = vpop.f32.mrb[0].mxu0
        %v1253 = vpop.f32.mrb[0].mxu0
        %v1254 = vadd.f32 %v1205, %v1253
        %v1255 = vpop.f32.mrb[0].mxu0
        %1256 = vmatprep.mubr.bf16.mxu0 %v711
        %1257 = vmatmul.mubr.bf16.gmra.mrb[0].mxu0 %v710
        %v1258 = vpop.f32.mrb[0].mxu0
        %v1259 = vadd.f32 %v1210, %v1258
        %v1260 = vpop.f32.mrb[0].mxu0
        %v1261 = vpop.f32.mrb[0].mxu0
        %v1262 = vadd.f32 %v1213, %v1261
        %v1263 = vpop.f32.mrb[0].mxu0
        %1264 = vdwg.mxu0
        %1265 = vmatprep.subr.bf16.mxu0 0
        %1266 = vmatpush1.bf16.msra.mxu0 %v1055
        %1267 = vmatprep.subr.bf16.mxu0 0
        %1268 = vmatpush1.bf16.msra.mxu0 %v1056
        %1269 = vmatprep.subr.bf16.mxu0 0
        %1270 = vmatpush1.bf16.msra.mxu0 %v1057
        %1271 = vmatprep.subr.bf16.mxu0 0
        %1272 = vmatpush1.bf16.msra.mxu0 %v1058
        %1273 = vmatprep.subr.bf16.mxu0 0
        %1274 = vmatpush1.bf16.msra.mxu0 %v1059
        %1275 = vmatprep.subr.bf16.mxu0 0
        %1276 = vmatpush1.bf16.msra.mxu0 %v1060
        %1277 = vmatprep.subr.bf16.mxu0 0
        %1278 = vmatpush1.bf16.msra.mxu0 %v1061
        %1279 = vmatprep.subr.bf16.mxu0 0
        %1280 = vmatpush1.bf16.msra.mxu0 %v1062
        %1281 = vmatprep.subr.bf16.mxu0 0
        %1282 = vmatpush1.bf16.msra.mxu0 %v1063
        %1283 = vmatprep.subr.bf16.mxu0 0
        %1284 = vmatpush1.bf16.msra.mxu0 %v1064
        %1285 = vmatprep.subr.bf16.mxu0 0
        %1286 = vmatpush1.bf16.msra.mxu0 %v1065
        %1287 = vmatprep.subr.bf16.mxu0 0
        %1288 = vmatpush1.bf16.msra.mxu0 %v1066
        %1289 = vmatprep.subr.bf16.mxu0 0
        %1290 = vmatpush1.bf16.msra.mxu0 %v1067
        %1291 = vmatprep.subr.bf16.mxu0 0
        %1292 = vmatpush1.bf16.msra.mxu0 %v1068
        %1293 = vmatprep.subr.bf16.mxu0 0
        %1294 = vmatpush1.bf16.msra.mxu0 %v1069
        %1295 = vmatprep.subr.bf16.mxu0 0
        %1296 = vmatpush1.bf16.msra.mxu0 %v1070
        %1297 = vmatprep.mubr.bf16.mxu0 %v704
        %1298 = vmatmul.mubr.bf16.gmra.mrb[0].mxu0 %v703
        %v1299 = vpop.f32.mrb[0].mxu0
        %v1300 = vadd.f32 %v1251, %v1299
        %v1301 = vpop.f32.mrb[0].mxu0
        %v1302 = vpop.f32.mrb[0].mxu0
        %v1303 = vadd.f32 %v1254, %v1302
        %v1304 = vpop.f32.mrb[0].mxu0
        %1305 = vmatprep.mubr.bf16.mxu0 %v713
        %1306 = vmatmul.mubr.bf16.gmra.mrb[0].mxu0 %v712
        %v1307 = vpop.f32.mrb[0].mxu0
        %v1308 = vadd.f32 %v1259, %v1307
        %v1309 = vpop.f32.mrb[0].mxu0
        %v1310 = vpop.f32.mrb[0].mxu0
        %v1311 = vadd.f32 %v1262, %v1310
        %v1312 = vpop.f32.mrb[0].mxu0
        %1313 = vdwg.mxu0
        %1314 = vmatprep.subr.bf16.mxu0 0
        %1315 = vmatpush1.bf16.msra.mxu0 %v1071
        %1316 = vmatprep.subr.bf16.mxu0 0
        %1317 = vmatpush1.bf16.msra.mxu0 %v1072
        %1318 = vmatprep.subr.bf16.mxu0 0
        %1319 = vmatpush1.bf16.msra.mxu0 %v1073
        %1320 = vmatprep.subr.bf16.mxu0 0
        %1321 = vmatpush1.bf16.msra.mxu0 %v1074
        %1322 = vmatprep.subr.bf16.mxu0 0
        %1323 = vmatpush1.bf16.msra.mxu0 %v1075
        %1324 = vmatprep.subr.bf16.mxu0 0
        %1325 = vmatpush1.bf16.msra.mxu0 %v1076
        %1326 = vmatprep.subr.bf16.mxu0 0
        %1327 = vmatpush1.bf16.msra.mxu0 %v1077
        %1328 = vmatprep.subr.bf16.mxu0 0
        %1329 = vmatpush1.bf16.msra.mxu0 %v1078
        %1330 = vmatprep.subr.bf16.mxu0 0
        %1331 = vmatpush1.bf16.msra.mxu0 %v1079
        %1332 = vmatprep.subr.bf16.mxu0 0
        %1333 = vmatpush1.bf16.msra.mxu0 %v1080
        %1334 = vmatprep.subr.bf16.mxu0 0
        %1335 = vmatpush1.bf16.msra.mxu0 %v1081
        %1336 = vmatprep.subr.bf16.mxu0 0
        %1337 = vmatpush1.bf16.msra.mxu0 %v1082
        %1338 = vmatprep.subr.bf16.mxu0 0
        %1339 = vmatpush1.bf16.msra.mxu0 %v1083
        %1340 = vmatprep.subr.bf16.mxu0 0
        %1341 = vmatpush1.bf16.msra.mxu0 %v1084
        %1342 = vmatprep.subr.bf16.mxu0 0
        %1343 = vmatpush1.bf16.msra.mxu0 %v1085
        %1344 = vmatprep.subr.bf16.mxu0 0
        %1345 = vmatpush1.bf16.msra.mxu0 %v1086
        %1346 = vmatprep.mubr.bf16.mxu0 %v706
        %1347 = vmatmul.mubr.bf16.gmra.mrb[0].mxu0 %v705
        %v1348 = vpop.f32.mrb[0].mxu0
        %v1349 = vadd.f32 %v1300, %v1348
        %v1350 = vpop.f32.mrb[0].mxu0
        %v1351 = vpop.f32.mrb[0].mxu0
        %v1352 = vadd.f32 %v1303, %v1351
        %v1353 = vpop.f32.mrb[0].mxu0
        %1354 = vmatprep.mubr.bf16.mxu0 %v715
        %1355 = vmatmul.mubr.bf16.gmra.mrb[0].mxu0 %v714
        %v1356 = vpop.f32.mrb[0].mxu0
        %v1357 = vadd.f32 %v1308, %v1356
        %v1358 = vpop.f32.mrb[0].mxu0
        %v1359 = vpop.f32.mrb[0].mxu0
        %v1360 = vadd.f32 %v1311, %v1359
        %v1361 = vpop.f32.mrb[0].mxu0
        %1362 = vdwg.mxu0
        %1363 = vmatprep.subr.bf16.mxu0 0
        %1364 = vmatpush1.bf16.msra.mxu0 %v1087
        %1365 = vmatprep.subr.bf16.mxu0 0
        %1366 = vmatpush1.bf16.msra.mxu0 %v1088
        %1367 = vmatprep.subr.bf16.mxu0 0
        %1368 = vmatpush1.bf16.msra.mxu0 %v1089
        %1369 = vmatprep.subr.bf16.mxu0 0
        %1370 = vmatpush1.bf16.msra.mxu0 %v1090
        %1371 = vmatprep.subr.bf16.mxu0 0
        %1372 = vmatpush1.bf16.msra.mxu0 %v1091
        %1373 = vmatprep.subr.bf16.mxu0 0
        %1374 = vmatpush1.bf16.msra.mxu0 %v1092
        %1375 = vmatprep.subr.bf16.mxu0 0
        %1376 = vmatpush1.bf16.msra.mxu0 %v1093
        %1377 = vmatprep.subr.bf16.mxu0 0
        %1378 = vmatpush1.bf16.msra.mxu0 %v1094
        %1379 = vmatprep.subr.bf16.mxu0 0
        %1380 = vmatpush1.bf16.msra.mxu0 0
        %1381 = vmatprep.subr.bf16.mxu0 0
        %1382 = vmatpush1.bf16.msra.mxu0 0
        %1383 = vmatprep.subr.bf16.mxu0 0
        %1384 = vmatpush1.bf16.msra.mxu0 0
        %1385 = vmatprep.subr.bf16.mxu0 0
        %1386 = vmatpush1.bf16.msra.mxu0 0
        %1387 = vmatprep.subr.bf16.mxu0 0
        %1388 = vmatpush1.bf16.msra.mxu0 0
        %1389 = vmatprep.subr.bf16.mxu0 0
        %1390 = vmatpush1.bf16.msra.mxu0 0
        %1391 = vmatprep.subr.bf16.mxu0 0
        %1392 = vmatpush1.bf16.msra.mxu0 0
        %1393 = vmatprep.subr.bf16.mxu0 0
        %1394 = vmatpush1.bf16.msra.mxu0 0
        %1395 = vmatprep.mubr.bf16.mxu0 0
        %1396 = vmatmul.mubr.bf16.gmra.mrb[0].mxu0 %v707
        %v1397 = vpop.f32.mrb[0].mxu0
        %v1398 = vadd.f32 %v1349, %v1397
        %v1399 = vpop.f32.mrb[0].mxu0
        %v1400 = vpop.f32.mrb[0].mxu0
        %v1401 = vadd.f32 %v1352, %v1400
        %v1402 = vpop.f32.mrb[0].mxu0
        %1403 = vmatprep.mubr.bf16.mxu0 0
        %1404 = vmatmul.mubr.bf16.gmra.mrb[0].mxu0 %v716
        %v1405 = vpop.f32.mrb[0].mxu0
        %v1406 = vadd.f32 %v1357, %v1405
        %v1407 = vpop.f32.mrb[0].mxu0
        %v1408 = vpop.f32.mrb[0].mxu0
        %v1409 = vadd.f32 %v1360, %v1408
        %v1410 = vpop.f32.mrb[0].mxu0
        %1411 = vdwg.mxu0
        %v1412 = vadd.f32 %v475, %v1398
        %v1413 = vadd.f32 %v476, %v1401
        %v1414 = vadd.f32 %v477, %v1406
        %v1415 = vadd.f32 %v478, %v1409
        %1416 = vst [vmem:[%s446] sm:$0xff] %v1412
        %1417 = vst [vmem:[%s446 + $0x8] sm:$0xff] %v1413
        %1418 = vst [vmem:[%s446 + $0x10] sm:$0xff] %v1414
        %1419 = vst [vmem:[%s446 + $0x18] sm:$0xff] %v1415
        %v1420 = vld [vmem:[#allocation2] sm:$0xff]
        %v1421 = vld [vmem:[#allocation2 + $0x8] sm:$0xff]
        %v1422 = vld [vmem:[#allocation2 + $0x10] sm:$0xff]
        %v1423 = vld [vmem:[#allocation2 + $0x18] sm:$0xff]
        %v1424 = vld [vmem:[%s398] sm:$0xf]
        %v1425 = vld [vmem:[%s398 + $0x4] sm:$0xf]
        %v1426 = vld [vmem:[%s398 + $0x8] sm:$0xf]
        %v1427 = vld [vmem:[%s398 + $0xc] sm:$0xf]
        %v1428 = vld [vmem:[#allocation9] sm:$0xf]
        %v1429 = vld [vmem:[#allocation9 + $0x4] sm:$0xf]
        %v1430 = vld [vmem:[#allocation9 + $0x8] sm:$0xf]
        %v1431 = vld [vmem:[#allocation9 + $0xc] sm:$0xf]
        %v1432 = vld [vmem:[#allocation9 + $0x10] sm:$0xf]
        %v1433 = vld [vmem:[#allocation9 + $0x14] sm:$0xf]
        %v1434 = vld [vmem:[#allocation9 + $0x18] sm:$0xf]
        %v1435 = vld [vmem:[#allocation9 + $0x1c] sm:$0xf]
        %v1436 = vld [vmem:[#allocation9 + $0x20] sm:$0xf]
        %v1437 = vld [vmem:[#allocation9 + $0x24] sm:$0xf]
        %v1438 = vld [vmem:[#allocation9 + $0x28] sm:$0xf]
        %v1439 = vld [vmem:[#allocation9 + $0x2c] sm:$0xf]
        %v1440 = vld [vmem:[#allocation9 + $0x30] sm:$0xf]
        %v1441 = vld [vmem:[#allocation9 + $0x34] sm:$0xf]
        %v1442 = vld [vmem:[#allocation9 + $0x38] sm:$0xf]
        %v1443 = vld [vmem:[#allocation9 + $0x3c] sm:$0xf]
        %v1448 = vunpack.c.l.b16 %v1424
        %v1449 = vunpack.c.l.b16 %v1425
        %v1450 = vunpack.c.l.b16 %v1426
        %v1451 = vunpack.c.l.b16 %v1427
        %v1452 = vpack.c.b16 %v1449, %v1448
        %v1453 = vpack.c.b16 %v1451, %v1450
        %v1472 = vunpack.c.l.b16 %v1428
        %v1473 = vunpack.c.l.b16 %v1429
        %v1474 = vunpack.c.l.b16 %v1430
        %v1475 = vunpack.c.l.b16 %v1431
        %v1476 = vunpack.c.l.b16 %v1432
        %v1477 = vunpack.c.l.b16 %v1433
        %v1478 = vunpack.c.l.b16 %v1434
        %v1479 = vunpack.c.l.b16 %v1435
        %v1480 = vunpack.c.l.b16 %v1436
        %v1481 = vunpack.c.l.b16 %v1437
        %v1482 = vunpack.c.l.b16 %v1438
        %v1483 = vunpack.c.l.b16 %v1439
        %v1484 = vunpack.c.l.b16 %v1440
        %v1485 = vunpack.c.l.b16 %v1441
        %v1486 = vunpack.c.l.b16 %v1442
        %v1487 = vunpack.c.l.b16 %v1443
        %v1488 = vpack.c.b16 %v1473, %v1472
        %v1489 = vpack.c.b16 %v1475, %v1474
        %v1490 = vpack.c.b16 %v1477, %v1476
        %v1491 = vpack.c.b16 %v1479, %v1478
        %v1492 = vpack.c.b16 %v1481, %v1480
        %v1493 = vpack.c.b16 %v1483, %v1482
        %v1494 = vpack.c.b16 %v1485, %v1484
        %v1495 = vpack.c.b16 %v1487, %v1486
        %1504 = vmatprep.subr.bf16.mxu0 0
        %1505 = vmatpush1.bf16.msra.mxu0 %v1488
        %1506 = vmatprep.subr.bf16.mxu0 0
        %1507 = vmatpush1.bf16.msra.mxu0 %v1489
        %1508 = vmatprep.subr.bf16.mxu0 0
        %1509 = vmatpush1.bf16.msra.mxu0 %v1490
        %1510 = vmatprep.subr.bf16.mxu0 0
        %1511 = vmatpush1.bf16.msra.mxu0 %v1491
        %1512 = vmatprep.subr.bf16.mxu0 0
        %1513 = vmatpush1.bf16.msra.mxu0 %v1492
        %1514 = vmatprep.subr.bf16.mxu0 0
        %1515 = vmatpush1.bf16.msra.mxu0 %v1493
        %1516 = vmatprep.subr.bf16.mxu0 0
        %1517 = vmatpush1.bf16.msra.mxu0 %v1494
        %1518 = vmatprep.subr.bf16.mxu0 0
        %1519 = vmatpush1.bf16.msra.mxu0 %v1495
        %1520 = vmatprep.subr.bf16.mxu0 0
        %1521 = vmatpush1.bf16.msra.mxu0 0
        %1522 = vmatprep.subr.bf16.mxu0 0
        %1523 = vmatpush1.bf16.msra.mxu0 0
        %1524 = vmatprep.subr.bf16.mxu0 0
        %1525 = vmatpush1.bf16.msra.mxu0 0
        %1526 = vmatprep.subr.bf16.mxu0 0
        %1527 = vmatpush1.bf16.msra.mxu0 0
        %1528 = vmatprep.subr.bf16.mxu0 0
        %1529 = vmatpush1.bf16.msra.mxu0 0
        %1530 = vmatprep.subr.bf16.mxu0 0
        %1531 = vmatpush1.bf16.msra.mxu0 0
        %1532 = vmatprep.subr.bf16.mxu0 0
        %1533 = vmatpush1.bf16.msra.mxu0 0
        %1534 = vmatprep.subr.bf16.mxu0 0
        %1535 = vmatpush1.bf16.msra.mxu0 0
        %1536 = vmatprep.mubr.bf16.mxu0 0
        %1537 = vmatmul.mubr.bf16.gmra.mrb[0].mxu0 %v1452
        %v1538 = vpop.f32.mrb[0].mxu0
        %v1539 = vadd.f32 0.0, %v1538
        %v1540 = vpop.f32.mrb[0].mxu0
        %v1541 = vpop.f32.mrb[0].mxu0
        %v1542 = vadd.f32 0.0, %v1541
        %v1543 = vpop.f32.mrb[0].mxu0
        %1544 = vmatprep.mubr.bf16.mxu0 0
        %1545 = vmatmul.mubr.bf16.gmra.mrb[0].mxu0 %v1453
        %v1546 = vpop.f32.mrb[0].mxu0
        %v1547 = vadd.f32 0.0, %v1546
        %v1548 = vpop.f32.mrb[0].mxu0
        %v1549 = vpop.f32.mrb[0].mxu0
        %v1550 = vadd.f32 0.0, %v1549
        %v1551 = vpop.f32.mrb[0].mxu0
        %1552 = vdwg.mxu0
        %v1553 = vadd.f32 %v1420, %v1539
        %v1554 = vadd.f32 %v1421, %v1542
        %v1555 = vadd.f32 %v1422, %v1547
        %v1556 = vadd.f32 %v1423, %v1550
        %1557 = vst [vmem:[#allocation2] sm:$0xff] %v1553
        %1558 = vst [vmem:[#allocation2 + $0x8] sm:$0xff] %v1554
        %1559 = vst [vmem:[#allocation2 + $0x10] sm:$0xff] %v1555
        %1560 = vst [vmem:[#allocation2 + $0x18] sm:$0xff] %v1556
        // Predicated region
        $region69: #{tpu_custom_call.1} parent=47 // pred_check
          %p1561 = pneg %p463
        $region70: #{tpu_custom_call.1} parent=47 // pred_check_branch
          %1563 = sbr.rel (%p1561) target = $region72
        $region71: #{tpu_custom_call.1} parent=47 // pred_region
          %v1564 = vld [vmem:[%s446] sm:$0xff]
          %v1565 = vld [vmem:[%s446 + $0x8] sm:$0xff]
          %v1566 = vld [vmem:[%s446 + $0x10] sm:$0xff]
          %v1567 = vld [vmem:[%s446 + $0x18] sm:$0xff]
          %v1568 = vld [vmem:[%s452] sm:$0x1]
          %v1570 = vlaneseq
          %v1571 = vshrl.u32 %v1570, 7
          %v1572 = vsub.s32 0, %v1571
          %v1573 = vrot.slane %v1568, %v1572
          %v1575 = vmul.f32 %v1564, %v1573
          %v1576 = vmul.f32 %v1565, %v1573
          %v1577 = vmul.f32 %v1566, %v1573
          %v1578 = vmul.f32 %v1567, %v1573
          %v1579 = vld [vmem:[%s455] sm:$0x1]
          %v1581 = vlaneseq
          %v1582 = vshrl.u32 %v1581, 7
          %v1583 = vsub.s32 0, %v1582
          %v1584 = vrot.slane %v1579, %v1583
          %v1586 = vadd.f32 %v1575, %v1584
          %v1587 = vadd.f32 %v1576, %v1584
          %v1588 = vadd.f32 %v1577, %v1584
          %v1589 = vadd.f32 %v1578, %v1584
          %v1590 = vmax.f32 %v1586, 0.0
          %v1591 = vmax.f32 %v1587, 0.0
          %v1592 = vmax.f32 %v1588, 0.0
          %v1593 = vmax.f32 %v1589, 0.0
          %v1594 = vld [vmem:[#allocation2] sm:$0xff]
          %v1595 = vld [vmem:[#allocation2 + $0x8] sm:$0xff]
          %v1596 = vld [vmem:[#allocation2 + $0x10] sm:$0xff]
          %v1597 = vld [vmem:[#allocation2 + $0x18] sm:$0xff]
          %v1598 = vadd.f32 %v1590, %v1594
          %v1599 = vadd.f32 %v1591, %v1595
          %v1600 = vadd.f32 %v1592, %v1596
          %v1601 = vadd.f32 %v1593, %v1597
          %v1602 = vld [vmem:[%s460] sm:$0x1]
          %v1604 = vlaneseq
          %v1605 = vshrl.u32 %v1604, 7
          %v1606 = vsub.s32 0, %v1605
          %v1607 = vrot.slane %v1602, %v1606
          %v1609 = vadd.f32 %v1598, %v1607
          %v1610 = vadd.f32 %v1599, %v1607
          %v1611 = vadd.f32 %v1600, %v1607
          %v1612 = vadd.f32 %v1601, %v1607
          %1613 = vst [vmem:[%s446] sm:$0xff] %v1609
          %1614 = vst [vmem:[%s446 + $0x8] sm:$0xff] %v1610
          %1615 = vst [vmem:[%s446 + $0x10] sm:$0xff] %v1611
          %1616 = vst [vmem:[%s446 + $0x18] sm:$0xff] %v1612
        $region72: #{tpu_custom_call.1} parent=47 // pred_fallthru
          _
        %s1617 = sand.u32 %s244, 1
        %s1618 = scalar_lea.sflag [#allocation5], %s1617
        %s1619 = sand.u32 %s244, 1
        %s1620 = smul.addr %s1619, 32
        %s1621 = scalar_lea.vmem [#allocation10], %s1620
        // Predicated region
        $region73: #{tpu_custom_call.1} parent=47 // pred_check
          %p1622 = pneg %p254
        $region74: #{tpu_custom_call.1} parent=47 // pred_check_branch
          %1624 = sbr.rel (%p1622) target = $region76
        $region75: #{tpu_custom_call.1} parent=47 // pred_region
          %s1625 = smul.u32 4, %s30
          %s1627 = ssub.s32 512, 512
          %1628 = vsyncadd %s1618, %s1627
          %s1629 = sadd.s32 %s31, %s1625
          %s1630 = smul.addr %s1629, 128
          %s1631 = scalar_lea.hbm %s7, %s1630
          %s1632 = sshll.u32 %s1621, 4
          %s1633 = int_to_ptr.vmem [resolvable:$true] %s1632
          %1638 = dma.vmem_to_hbm [thread:$0]  %s1633, 512, %s1631, %s1618, 128, 128, 8
        $region76: #{tpu_custom_call.1} parent=47 // pred_fallthru
          _
      $region48: #{tpu_custom_call.1} parent=5 // pred_fallthru
        _
      %p1639 = scmp.le.s32.totalorder 2, %s20
      // Predicated region
      $region77: #{tpu_custom_call.1} parent=5 // pred_check
        %p1640 = pneg %p1639
      $region78: #{tpu_custom_call.1} parent=5 // pred_check_branch
        %1642 = sbr.rel (%p1640) target = $region80
      $region79: #{tpu_custom_call.1} parent=5 // pred_region
        %s1643 = ssub.s32 %s20, 2
        // Predicated region
        $region81: #{tpu_custom_call.1} parent=79 // pred_check
          %p1644 = pneg %p260
        $region82: #{tpu_custom_call.1} parent=79 // pred_check_branch
          %1646 = sbr.rel (%p1644) target = $region84
        $region83: #{tpu_custom_call.1} parent=79 // pred_region
          %s1647 = sand.u32 %s245, 1
          %s1648 = scalar_lea.sflag [#allocation5], %s1647
          %s1649 = sand.u32 %s245, 1
          %s1650 = smul.addr %s1649, 32
          %s1651 = scalar_lea.vmem [#allocation10], %s1650
          %1652 = dma.done %s1648, 512
        $region84: #{tpu_custom_call.1} parent=79 // pred_fallthru
          _
      $region80: #{tpu_custom_call.1} parent=5 // pred_fallthru
        _
    $region6: #{tpu_custom_call.1} parent=1 // loop_footer
      %s24 = sadd.s32 1, %s20
    $region7: #{tpu_custom_call.1} parent=1 // loop_footer_branch
      %19 = sbr.rel target = $region3
    $region8: #{tpu_custom_call.1} parent=1 // loop_exit
      _
    %1653 = vsyncpa [#allocation4], 1
    %s1654 = scalar_lea.sflag [#allocation4], 1
    %1655 = vsyncpa %s1654, 1
    %1656 = vsyncpa [#allocation7], 1
    %1657 = vsyncpa [#allocation5], 1
    %s1658 = scalar_lea.sflag [#allocation5], 1
    %1659 = vsyncpa %s1658, 1

</llo_original>
